<compile_context>
chip_gen: v6e
topology: v6e:2x2x1
jax: 0.10.0
libtpu: 0.0.40
codegen_flags: <defaults>
</compile_context>

<pallas_src>
import functools

import jax
import jax.numpy as jnp
from jax.experimental import pallas as pl
from jax.experimental.pallas import tpu as pltpu


# ----------------------------- Pallas kernels ------------------------------ #

def _stats_kernel(x_ref, w_ref, sum_ref, sq_ref, *, th, c4):
    # x_ref: (H+2, W, 3*Cin) bf16 (whole padded image, column shifts pre-concatenated)
    # w_ref: (3, 3*Cin, 4*Cout) bf16 (one slice per row shift)
    # sum_ref / sq_ref: (1, 1, 4*Cout) f32 per-tile BN partial statistics
    base = pl.program_id(1) * th
    sums = jnp.zeros((1, c4), jnp.float32)
    sqs = jnp.zeros((1, c4), jnp.float32)
    for t in range(th):                      # static unroll, th is small
        r = base + t
        acc = jnp.dot(x_ref[r], w_ref[0], preferred_element_type=jnp.float32)
        acc = acc + jnp.dot(x_ref[r + 1], w_ref[1], preferred_element_type=jnp.float32)
        acc = acc + jnp.dot(x_ref[r + 2], w_ref[2], preferred_element_type=jnp.float32)
        sums = sums + jnp.sum(acc, axis=0, keepdims=True)
        sqs = sqs + jnp.sum(acc * acc, axis=0, keepdims=True)
    sum_ref[0] = sums
    sq_ref[0] = sqs


def _apply_kernel(x_ref, w_ref, p_ref, o_ref, *, th):
    # Recompute the thin-K matmul, then fused BN affine + PReLU on the single store.
    # p_ref: (3, 1, 4*Cout) f32 = [scale; shift; alpha]
    base = pl.program_id(1) * th
    scale = p_ref[0]                         # (1, C4)
    shift = p_ref[1]
    alpha = p_ref[2]
    for t in range(th):
        r = base + t
        acc = jnp.dot(x_ref[r], w_ref[0], preferred_element_type=jnp.float32)
        acc = acc + jnp.dot(x_ref[r + 1], w_ref[1], preferred_element_type=jnp.float32)
        acc = acc + jnp.dot(x_ref[r + 2], w_ref[2], preferred_element_type=jnp.float32)
        z = acc * scale + shift
        o_ref[t] = jnp.where(z >= 0.0, z, alpha * z)


# ------------------------------- helpers ------------------------------------ #

def _round_up(x, m):
    return (x + m - 1) // m * m


def _pick_rows(h, row_bytes, n_batch, max_rows=8, target_steps=8, max_block_bytes=4 << 20):
    """Rows per grid step: divisor of H, bounded block size, and enough grid steps
    for megacore sharding / DMA-compute overlap (review: never collapse to 1 step)."""
    divs = [d for d in range(1, h + 1) if h % d == 0]
    th = 1
    for d in divs:
        if d <= max_rows and d * row_bytes <= max_block_bytes:
            th = d
    while th > 1 and n_batch * (h // th) < target_steps:
        th = [d for d in divs if d < th][-1]
    return th


# ------------------------------- wrapper ----------------------------------- #

def deconv_block_forward(x_nchw, weight, bias, gamma, beta, prelu_alpha, eps=1e-5):
    """ConvTranspose2d(Cin,Cout,4,2,1) -> BatchNorm2d(batch stats) -> PReLU.

    `bias` is accepted for interface parity but intentionally unused: a per-channel
    constant added before train-mode BatchNorm is exactly cancelled by the mean
    subtraction, so the forward output is unchanged.
    """
    del bias
    N, Cin, H, W = x_nchw.shape
    Cin_w, Cout, KH, KW = weight.shape
    assert Cin_w == Cin and (KH, KW) == (4, 4)
    C4 = 4 * Cout          # 4 sub-pixel phases concatenated on lanes
    K3 = 3 * Cin           # 3 column shifts concatenated on lanes

    # NHWC, bf16 (MXU + half the DMA), zero-pad 1px, pre-concat the 3 column shifts.
    x = jnp.transpose(x_nchw, (0, 2, 3, 1)).astype(jnp.bfloat16)
    xp = jnp.pad(x, ((0, 0), (1, 1), (1, 1), (0, 0)))
    xc = jnp.concatenate(
        [xp[:, :, 0:W, :], xp[:, :, 1:W + 1, :], xp[:, :, 2:W + 2, :]], axis=-1)
    # xc: (N, H+2, W, 3*Cin) bf16; xc[n, i+sh, j, sw*Cin+c] = x[n, i+sh-1, j+sw-1, c]

    # Phase-concatenated weight, one (3*Cin, 4*Cout) slice per row shift sh in {0,1,2}.
    # Output row 2i+dy taps (row shift s, kernel row k): dy=0 -> (-1,3),(0,1); dy=1 -> (0,2),(1,0).
    taps = {0: ((-1, 3), (0, 1)), 1: ((0, 2), (1, 0))}
    wmat = jnp.zeros((3, K3, C4), jnp.float32)
    for dy in (0, 1):
        for (sy, ky) in taps[dy]:
            for dx in (0, 1):
                for (sx, kx) in taps[dx]:
                    ph = 2 * dy + dx
                    wmat = wmat.at[sy + 1,
                                   (sx + 1) * Cin:(sx + 2) * Cin,
                                   ph * Cout:(ph + 1) * Cout].set(weight[:, :, ky, kx])
    wmat = wmat.astype(jnp.bfloat16)

    TH = _pick_rows(H, W * C4 * 4, N)
    n_h = H // TH
    n_tiles = N * n_h
    grid = (N, n_h)

    # VMEM-budget-aware limit (padded block bytes, double buffered), >= 32 MiB, < 96 MiB.
    xc_blk = (H + 2) * _round_up(W, 8) * _round_up(K3, 128) * 2
    w_blk = 3 * _round_up(K3, 8) * _round_up(C4, 128) * 2
    o_blk = TH * _round_up(W, 8) * _round_up(C4, 128) * 4
    vmem_lim = int(min(96 << 20, max(32 << 20, 3 * 2 * (xc_blk + w_blk + o_blk))))

    compiler_params = pltpu.CompilerParams(
        dimension_semantics=("parallel", "parallel"),
        vmem_limit_bytes=vmem_lim)

    xc_spec = pl.BlockSpec((None, H + 2, W, K3), lambda n, h: (n, 0, 0, 0))
    w_spec = pl.BlockSpec((3, K3, C4), lambda n, h: (0, 0, 0))

    # ---- pass 1: per-tile BN partial statistics only (no big intermediate in HBM) ----
    psum, psq = pl.pallas_call(
        functools.partial(_stats_kernel, th=TH, c4=C4),
        out_shape=(jax.ShapeDtypeStruct((n_tiles, 1, C4), jnp.float32),
                   jax.ShapeDtypeStruct((n_tiles, 1, C4), jnp.float32)),
        grid_spec=pltpu.PrefetchScalarGridSpec(
            num_scalar_prefetch=0,
            grid=grid,
            in_specs=[xc_spec, w_spec],
            out_specs=[
                pl.BlockSpec((1, 1, C4), lambda n, h: (n * n_h + h, 0, 0)),
                pl.BlockSpec((1, 1, C4), lambda n, h: (n * n_h + h, 0, 0)),
            ],
        ),
        compiler_params=compiler_params,
    )(xc, wmat)

    # ---- fold partial stats -> BN scale/shift (tiny, plain JAX) ----
    sum_c = jnp.sum(psum.reshape(n_tiles, 4, Cout), axis=(0, 1))
    sq_c = jnp.sum(psq.reshape(n_tiles, 4, Cout), axis=(0, 1))
    count = jnp.float32(4 * N * H * W)                       # = N * 2H * 2W
    mean = sum_c / count
    var = jnp.maximum(sq_c / count - mean * mean, 0.0)       # biased (train BN)
    # TODO(synk): E[x^2]-E[x]^2 in f32 is cancellation-prone for very large N*H*W.
    scale_c = gamma.astype(jnp.float32) / jnp.sqrt(var + eps)
    shift_c = beta.astype(jnp.float32) - mean * scale_c
    alpha_c = jnp.broadcast_to(
        jnp.asarray(prelu_alpha, jnp.float32).reshape(-1), (Cout,))
    params = jnp.stack([jnp.tile(scale_c, 4),
                        jnp.tile(shift_c, 4),
                        jnp.tile(alpha_c, 4)], axis=0).reshape(3, 1, C4)

    # ---- pass 2: recompute matmul + fused BN + PReLU, single output store ----
    y = pl.pallas_call(
        functools.partial(_apply_kernel, th=TH),
        out_shape=jax.ShapeDtypeStruct((N, H, W, C4), jnp.float32),
        grid_spec=pltpu.PrefetchScalarGridSpec(
            num_scalar_prefetch=0,
            grid=grid,
            in_specs=[xc_spec, w_spec,
                      pl.BlockSpec((3, 1, C4), lambda n, h: (0, 0, 0))],
            out_specs=pl.BlockSpec((None, TH, W, C4), lambda n, h: (n, h, 0, 0)),
        ),
        compiler_params=compiler_params,
    )(xc, wmat, params)

    # interleave sub-pixel phases back to full resolution, return NCHW (module contract)
    out = y.reshape(N, H, W, 2, 2, Cout)             # (n, i, j, dy, dx, c)
    out = jnp.transpose(out, (0, 5, 1, 3, 2, 4))     # (n, c, i, dy, j, dx)
    return out.reshape(N, Cout, 2 * H, 2 * W)


# --------------------------------- main ------------------------------------ #

if __name__ == "__main__":
    key = jax.random.PRNGKey(0)
    N, Cin, Cout, H, W = 2, 4, 8, 16, 16
    k1, k2, k3, k4, k5 = jax.random.split(key, 5)

    x = jax.random.normal(k1, (N, Cin, H, W), jnp.float32)
    # ConvTranspose2d weight layout: (in_channels, out_channels, kH, kW)
    weight = jax.random.normal(k2, (Cin, Cout, 4, 4), jnp.float32) / jnp.sqrt(Cin * 16.0)
    bias = 0.1 * jax.random.normal(k3, (Cout,), jnp.float32)
    gamma = 1.0 + 0.1 * jax.random.normal(k4, (Cout,), jnp.float32)
    beta = 0.1 * jax.random.normal(k5, (Cout,), jnp.float32)
    alpha = jnp.float32(0.25)                 # PReLU default init

    fwd = jax.jit(deconv_block_forward)
    out = fwd(x, weight, bias, gamma, beta, alpha)
    jax.block_until_ready(out)
    assert out.shape == (N, Cout, 2 * H, 2 * W)

    # ---- pure-JAX reference (same bf16-rounded inputs, f32 math, bias included) ----
    xb = x.astype(jnp.bfloat16).astype(jnp.float32)
    wb = weight.astype(jnp.bfloat16).astype(jnp.float32)
    buf = jnp.zeros((N, Cout, 2 * H + 2, 2 * W + 2), jnp.float32)
    for ky in range(4):
        for kx in range(4):
            contrib = jnp.einsum('nchw,cd->ndhw', xb, wb[:, :, ky, kx],
                                 precision=jax.lax.Precision.HIGHEST)
            buf = buf.at[:, :, ky:ky + 2 * H:2, kx:kx + 2 * W:2].add(contrib)
    conv = buf[:, :, 1:1 + 2 * H, 1:1 + 2 * W] + bias[None, :, None, None]
    mu = jnp.mean(conv, axis=(0, 2, 3), keepdims=True)
    var = jnp.mean((conv - mu) ** 2, axis=(0, 2, 3), keepdims=True)
    zn = (conv - mu) / jnp.sqrt(var + 1e-5)
    zn = zn * gamma[None, :, None, None] + beta[None, :, None, None]
    ref = jnp.where(zn >= 0, zn, alpha * zn)

    err = float(jnp.max(jnp.abs(out - ref)))
    assert err < 5e-3, f"max abs err {err}"
    print("KERNEL_OK")
</pallas_src>

<mosaic_0001>
module attributes {stable_mosaic.version = 11 : i64} {
  func.func @_stats_kernel(%arg0: i32, %arg1: i32, %arg2: memref<1x18x16x12xbf16, #tpu.memory_space<vmem>>, %arg3: memref<3x12x32xbf16, #tpu.memory_space<vmem>>, %arg4: memref<1x1x32xf32, #tpu.memory_space<vmem>>, %arg5: memref<1x1x32xf32, #tpu.memory_space<vmem>>) attributes {dimension_semantics = [#tpu.dimension_semantics<parallel>, #tpu.dimension_semantics<parallel>], iteration_bounds = array<i64: 2, 4>, scalar_prefetch = 0 : i64, scratch_operands = 0 : i64, tpu.core_type = #tpu.core_type<tc>, window_params = [{transform_indices = @transform_0, window_bounds = array<i64: 1, 18, 16, 12>}, {pipeline_mode = #tpu.pipeline_mode<synchronous>, transform_indices = @transform_1, window_bounds = array<i64: 3, 12, 32>}, {transform_indices = @transform_2, window_bounds = array<i64: 1, 1, 32>}, {transform_indices = @transform_3, window_bounds = array<i64: 1, 1, 32>}]} {
    %c4_i32 = arith.constant 4 : i32
    %0 = arith.muli %arg1, %c4_i32 : i32
    %cst = arith.constant 0.000000e+00 : f32
    %1 = vector.broadcast %cst : f32 to vector<1x32xf32>
    %cst_0 = arith.constant 0.000000e+00 : f32
    %2 = vector.broadcast %cst_0 : f32 to vector<1x32xf32>
    %c0_i32 = arith.constant 0 : i32
    %3 = arith.addi %0, %c0_i32 : i32
    %c0 = arith.constant 0 : index
    %4 = arith.index_cast %3 : i32 to index
    %c0_1 = arith.constant 0 : index
    %c0_2 = arith.constant 0 : index
    %5 = vector.load %arg2[%c0, %4, %c0_1, %c0_2] : memref<1x18x16x12xbf16, #tpu.memory_space<vmem>>, vector<1x1x16x12xbf16>
    %6 = vector.shape_cast %5 : vector<1x1x16x12xbf16> to vector<16x12xbf16>
    %c0_3 = arith.constant 0 : index
    %c0_4 = arith.constant 0 : index
    %c0_5 = arith.constant 0 : index
    %7 = vector.load %arg3[%c0_3, %c0_4, %c0_5] : memref<3x12x32xbf16, #tpu.memory_space<vmem>>, vector<1x12x32xbf16>
    %8 = vector.shape_cast %7 : vector<1x12x32xbf16> to vector<12x32xbf16>
    %cst_6 = arith.constant dense<0.000000e+00> : vector<16x32xf32>
    %9 = tpu.matmul %6, %8, %cst_6 {dimension_numbers = #tpu.dot_dimension_numbers<[1], [0], [0], [1], [0, 0, 1, 1], [], []>} : vector<16x12xbf16>, vector<12x32xbf16>, vector<16x32xf32> -> vector<16x32xf32>
    %c1_i32 = arith.constant 1 : i32
    %10 = arith.addi %3, %c1_i32 : i32
    %c0_7 = arith.constant 0 : index
    %11 = arith.index_cast %10 : i32 to index
    %c0_8 = arith.constant 0 : index
    %c0_9 = arith.constant 0 : index
    %12 = vector.load %arg2[%c0_7, %11, %c0_8, %c0_9] : memref<1x18x16x12xbf16, #tpu.memory_space<vmem>>, vector<1x1x16x12xbf16>
    %13 = vector.shape_cast %12 : vector<1x1x16x12xbf16> to vector<16x12xbf16>
    %c1 = arith.constant 1 : index
    %c0_10 = arith.constant 0 : index
    %c0_11 = arith.constant 0 : index
    %14 = vector.load %arg3[%c1, %c0_10, %c0_11] : memref<3x12x32xbf16, #tpu.memory_space<vmem>>, vector<1x12x32xbf16>
    %15 = vector.shape_cast %14 : vector<1x12x32xbf16> to vector<12x32xbf16>
    %cst_12 = arith.constant dense<0.000000e+00> : vector<16x32xf32>
    %16 = tpu.matmul %13, %15, %cst_12 {dimension_numbers = #tpu.dot_dimension_numbers<[1], [0], [0], [1], [0, 0, 1, 1], [], []>} : vector<16x12xbf16>, vector<12x32xbf16>, vector<16x32xf32> -> vector<16x32xf32>
    %17 = arith.addf %9, %16 : vector<16x32xf32>
    %c2_i32 = arith.constant 2 : i32
    %18 = arith.addi %3, %c2_i32 : i32
    %c0_13 = arith.constant 0 : index
    %19 = arith.index_cast %18 : i32 to index
    %c0_14 = arith.constant 0 : index
    %c0_15 = arith.constant 0 : index
    %20 = vector.load %arg2[%c0_13, %19, %c0_14, %c0_15] : memref<1x18x16x12xbf16, #tpu.memory_space<vmem>>, vector<1x1x16x12xbf16>
    %21 = vector.shape_cast %20 : vector<1x1x16x12xbf16> to vector<16x12xbf16>
    %c2 = arith.constant 2 : index
    %c0_16 = arith.constant 0 : index
    %c0_17 = arith.constant 0 : index
    %22 = vector.load %arg3[%c2, %c0_16, %c0_17] : memref<3x12x32xbf16, #tpu.memory_space<vmem>>, vector<1x12x32xbf16>
    %23 = vector.shape_cast %22 : vector<1x12x32xbf16> to vector<12x32xbf16>
    %cst_18 = arith.constant dense<0.000000e+00> : vector<16x32xf32>
    %24 = tpu.matmul %21, %23, %cst_18 {dimension_numbers = #tpu.dot_dimension_numbers<[1], [0], [0], [1], [0, 0, 1, 1], [], []>} : vector<16x12xbf16>, vector<12x32xbf16>, vector<16x32xf32> -> vector<16x32xf32>
    %25 = arith.addf %17, %24 : vector<16x32xf32>
    %cst_19 = arith.constant dense<0.000000e+00> : vector<32xf32>
    %26 = vector.multi_reduction <add>, %25, %cst_19 [0] : vector<16x32xf32> to vector<32xf32>
    %27 = vector.shape_cast %26 : vector<32xf32> to vector<1x32xf32>
    %28 = arith.addf %1, %27 : vector<1x32xf32>
    %29 = arith.mulf %25, %25 : vector<16x32xf32>
    %cst_20 = arith.constant dense<0.000000e+00> : vector<32xf32>
    %30 = vector.multi_reduction <add>, %29, %cst_20 [0] : vector<16x32xf32> to vector<32xf32>
    %31 = vector.shape_cast %30 : vector<32xf32> to vector<1x32xf32>
    %32 = arith.addf %2, %31 : vector<1x32xf32>
    %c1_i32_21 = arith.constant 1 : i32
    %33 = arith.addi %0, %c1_i32_21 : i32
    %c0_22 = arith.constant 0 : index
    %34 = arith.index_cast %33 : i32 to index
    %c0_23 = arith.constant 0 : index
    %c0_24 = arith.constant 0 : index
    %35 = vector.load %arg2[%c0_22, %34, %c0_23, %c0_24] : memref<1x18x16x12xbf16, #tpu.memory_space<vmem>>, vector<1x1x16x12xbf16>
    %36 = vector.shape_cast %35 : vector<1x1x16x12xbf16> to vector<16x12xbf16>
    %c0_25 = arith.constant 0 : index
    %c0_26 = arith.constant 0 : index
    %c0_27 = arith.constant 0 : index
    %37 = vector.load %arg3[%c0_25, %c0_26, %c0_27] : memref<3x12x32xbf16, #tpu.memory_space<vmem>>, vector<1x12x32xbf16>
    %38 = vector.shape_cast %37 : vector<1x12x32xbf16> to vector<12x32xbf16>
    %cst_28 = arith.constant dense<0.000000e+00> : vector<16x32xf32>
    %39 = tpu.matmul %36, %38, %cst_28 {dimension_numbers = #tpu.dot_dimension_numbers<[1], [0], [0], [1], [0, 0, 1, 1], [], []>} : vector<16x12xbf16>, vector<12x32xbf16>, vector<16x32xf32> -> vector<16x32xf32>
    %c1_i32_29 = arith.constant 1 : i32
    %40 = arith.addi %33, %c1_i32_29 : i32
    %c0_30 = arith.constant 0 : index
    %41 = arith.index_cast %40 : i32 to index
    %c0_31 = arith.constant 0 : index
    %c0_32 = arith.constant 0 : index
    %42 = vector.load %arg2[%c0_30, %41, %c0_31, %c0_32] : memref<1x18x16x12xbf16, #tpu.memory_space<vmem>>, vector<1x1x16x12xbf16>
    %43 = vector.shape_cast %42 : vector<1x1x16x12xbf16> to vector<16x12xbf16>
    %c1_33 = arith.constant 1 : index
    %c0_34 = arith.constant 0 : index
    %c0_35 = arith.constant 0 : index
    %44 = vector.load %arg3[%c1_33, %c0_34, %c0_35] : memref<3x12x32xbf16, #tpu.memory_space<vmem>>, vector<1x12x32xbf16>
    %45 = vector.shape_cast %44 : vector<1x12x32xbf16> to vector<12x32xbf16>
    %cst_36 = arith.constant dense<0.000000e+00> : vector<16x32xf32>
    %46 = tpu.matmul %43, %45, %cst_36 {dimension_numbers = #tpu.dot_dimension_numbers<[1], [0], [0], [1], [0, 0, 1, 1], [], []>} : vector<16x12xbf16>, vector<12x32xbf16>, vector<16x32xf32> -> vector<16x32xf32>
    %47 = arith.addf %39, %46 : vector<16x32xf32>
    %c2_i32_37 = arith.constant 2 : i32
    %48 = arith.addi %33, %c2_i32_37 : i32
    %c0_38 = arith.constant 0 : index
    %49 = arith.index_cast %48 : i32 to index
    %c0_39 = arith.constant 0 : index
    %c0_40 = arith.constant 0 : index
    %50 = vector.load %arg2[%c0_38, %49, %c0_39, %c0_40] : memref<1x18x16x12xbf16, #tpu.memory_space<vmem>>, vector<1x1x16x12xbf16>
    %51 = vector.shape_cast %50 : vector<1x1x16x12xbf16> to vector<16x12xbf16>
    %c2_41 = arith.constant 2 : index
    %c0_42 = arith.constant 0 : index
    %c0_43 = arith.constant 0 : index
    %52 = vector.load %arg3[%c2_41, %c0_42, %c0_43] : memref<3x12x32xbf16, #tpu.memory_space<vmem>>, vector<1x12x32xbf16>
    %53 = vector.shape_cast %52 : vector<1x12x32xbf16> to vector<12x32xbf16>
    %cst_44 = arith.constant dense<0.000000e+00> : vector<16x32xf32>
    %54 = tpu.matmul %51, %53, %cst_44 {dimension_numbers = #tpu.dot_dimension_numbers<[1], [0], [0], [1], [0, 0, 1, 1], [], []>} : vector<16x12xbf16>, vector<12x32xbf16>, vector<16x32xf32> -> vector<16x32xf32>
    %55 = arith.addf %47, %54 : vector<16x32xf32>
    %cst_45 = arith.constant dense<0.000000e+00> : vector<32xf32>
    %56 = vector.multi_reduction <add>, %55, %cst_45 [0] : vector<16x32xf32> to vector<32xf32>
    %57 = vector.shape_cast %56 : vector<32xf32> to vector<1x32xf32>
    %58 = arith.addf %28, %57 : vector<1x32xf32>
    %59 = arith.mulf %55, %55 : vector<16x32xf32>
    %cst_46 = arith.constant dense<0.000000e+00> : vector<32xf32>
    %60 = vector.multi_reduction <add>, %59, %cst_46 [0] : vector<16x32xf32> to vector<32xf32>
    %61 = vector.shape_cast %60 : vector<32xf32> to vector<1x32xf32>
    %62 = arith.addf %32, %61 : vector<1x32xf32>
    %c2_i32_47 = arith.constant 2 : i32
    %63 = arith.addi %0, %c2_i32_47 : i32
    %c0_48 = arith.constant 0 : index
    %64 = arith.index_cast %63 : i32 to index
    %c0_49 = arith.constant 0 : index
    %c0_50 = arith.constant 0 : index
    %65 = vector.load %arg2[%c0_48, %64, %c0_49, %c0_50] : memref<1x18x16x12xbf16, #tpu.memory_space<vmem>>, vector<1x1x16x12xbf16>
    %66 = vector.shape_cast %65 : vector<1x1x16x12xbf16> to vector<16x12xbf16>
    %c0_51 = arith.constant 0 : index
    %c0_52 = arith.constant 0 : index
    %c0_53 = arith.constant 0 : index
    %67 = vector.load %arg3[%c0_51, %c0_52, %c0_53] : memref<3x12x32xbf16, #tpu.memory_space<vmem>>, vector<1x12x32xbf16>
    %68 = vector.shape_cast %67 : vector<1x12x32xbf16> to vector<12x32xbf16>
    %cst_54 = arith.constant dense<0.000000e+00> : vector<16x32xf32>
    %69 = tpu.matmul %66, %68, %cst_54 {dimension_numbers = #tpu.dot_dimension_numbers<[1], [0], [0], [1], [0, 0, 1, 1], [], []>} : vector<16x12xbf16>, vector<12x32xbf16>, vector<16x32xf32> -> vector<16x32xf32>
    %c1_i32_55 = arith.constant 1 : i32
    %70 = arith.addi %63, %c1_i32_55 : i32
    %c0_56 = arith.constant 0 : index
    %71 = arith.index_cast %70 : i32 to index
    %c0_57 = arith.constant 0 : index
    %c0_58 = arith.constant 0 : index
    %72 = vector.load %arg2[%c0_56, %71, %c0_57, %c0_58] : memref<1x18x16x12xbf16, #tpu.memory_space<vmem>>, vector<1x1x16x12xbf16>
    %73 = vector.shape_cast %72 : vector<1x1x16x12xbf16> to vector<16x12xbf16>
    %c1_59 = arith.constant 1 : index
    %c0_60 = arith.constant 0 : index
    %c0_61 = arith.constant 0 : index
    %74 = vector.load %arg3[%c1_59, %c0_60, %c0_61] : memref<3x12x32xbf16, #tpu.memory_space<vmem>>, vector<1x12x32xbf16>
    %75 = vector.shape_cast %74 : vector<1x12x32xbf16> to vector<12x32xbf16>
    %cst_62 = arith.constant dense<0.000000e+00> : vector<16x32xf32>
    %76 = tpu.matmul %73, %75, %cst_62 {dimension_numbers = #tpu.dot_dimension_numbers<[1], [0], [0], [1], [0, 0, 1, 1], [], []>} : vector<16x12xbf16>, vector<12x32xbf16>, vector<16x32xf32> -> vector<16x32xf32>
    %77 = arith.addf %69, %76 : vector<16x32xf32>
    %c2_i32_63 = arith.constant 2 : i32
    %78 = arith.addi %63, %c2_i32_63 : i32
    %c0_64 = arith.constant 0 : index
    %79 = arith.index_cast %78 : i32 to index
    %c0_65 = arith.constant 0 : index
    %c0_66 = arith.constant 0 : index
    %80 = vector.load %arg2[%c0_64, %79, %c0_65, %c0_66] : memref<1x18x16x12xbf16, #tpu.memory_space<vmem>>, vector<1x1x16x12xbf16>
    %81 = vector.shape_cast %80 : vector<1x1x16x12xbf16> to vector<16x12xbf16>
    %c2_67 = arith.constant 2 : index
    %c0_68 = arith.constant 0 : index
    %c0_69 = arith.constant 0 : index
    %82 = vector.load %arg3[%c2_67, %c0_68, %c0_69] : memref<3x12x32xbf16, #tpu.memory_space<vmem>>, vector<1x12x32xbf16>
    %83 = vector.shape_cast %82 : vector<1x12x32xbf16> to vector<12x32xbf16>
    %cst_70 = arith.constant dense<0.000000e+00> : vector<16x32xf32>
    %84 = tpu.matmul %81, %83, %cst_70 {dimension_numbers = #tpu.dot_dimension_numbers<[1], [0], [0], [1], [0, 0, 1, 1], [], []>} : vector<16x12xbf16>, vector<12x32xbf16>, vector<16x32xf32> -> vector<16x32xf32>
    %85 = arith.addf %77, %84 : vector<16x32xf32>
    %cst_71 = arith.constant dense<0.000000e+00> : vector<32xf32>
    %86 = vector.multi_reduction <add>, %85, %cst_71 [0] : vector<16x32xf32> to vector<32xf32>
    %87 = vector.shape_cast %86 : vector<32xf32> to vector<1x32xf32>
    %88 = arith.addf %58, %87 : vector<1x32xf32>
    %89 = arith.mulf %85, %85 : vector<16x32xf32>
    %cst_72 = arith.constant dense<0.000000e+00> : vector<32xf32>
    %90 = vector.multi_reduction <add>, %89, %cst_72 [0] : vector<16x32xf32> to vector<32xf32>
    %91 = vector.shape_cast %90 : vector<32xf32> to vector<1x32xf32>
    %92 = arith.addf %62, %91 : vector<1x32xf32>
    %c3_i32 = arith.constant 3 : i32
    %93 = arith.addi %0, %c3_i32 : i32
    %c0_73 = arith.constant 0 : index
    %94 = arith.index_cast %93 : i32 to index
    %c0_74 = arith.constant 0 : index
    %c0_75 = arith.constant 0 : index
    %95 = vector.load %arg2[%c0_73, %94, %c0_74, %c0_75] : memref<1x18x16x12xbf16, #tpu.memory_space<vmem>>, vector<1x1x16x12xbf16>
    %96 = vector.shape_cast %95 : vector<1x1x16x12xbf16> to vector<16x12xbf16>
    %c0_76 = arith.constant 0 : index
    %c0_77 = arith.constant 0 : index
    %c0_78 = arith.constant 0 : index
    %97 = vector.load %arg3[%c0_76, %c0_77, %c0_78] : memref<3x12x32xbf16, #tpu.memory_space<vmem>>, vector<1x12x32xbf16>
    %98 = vector.shape_cast %97 : vector<1x12x32xbf16> to vector<12x32xbf16>
    %cst_79 = arith.constant dense<0.000000e+00> : vector<16x32xf32>
    %99 = tpu.matmul %96, %98, %cst_79 {dimension_numbers = #tpu.dot_dimension_numbers<[1], [0], [0], [1], [0, 0, 1, 1], [], []>} : vector<16x12xbf16>, vector<12x32xbf16>, vector<16x32xf32> -> vector<16x32xf32>
    %c1_i32_80 = arith.constant 1 : i32
    %100 = arith.addi %93, %c1_i32_80 : i32
    %c0_81 = arith.constant 0 : index
    %101 = arith.index_cast %100 : i32 to index
    %c0_82 = arith.constant 0 : index
    %c0_83 = arith.constant 0 : index
    %102 = vector.load %arg2[%c0_81, %101, %c0_82, %c0_83] : memref<1x18x16x12xbf16, #tpu.memory_space<vmem>>, vector<1x1x16x12xbf16>
    %103 = vector.shape_cast %102 : vector<1x1x16x12xbf16> to vector<16x12xbf16>
    %c1_84 = arith.constant 1 : index
    %c0_85 = arith.constant 0 : index
    %c0_86 = arith.constant 0 : index
    %104 = vector.load %arg3[%c1_84, %c0_85, %c0_86] : memref<3x12x32xbf16, #tpu.memory_space<vmem>>, vector<1x12x32xbf16>
    %105 = vector.shape_cast %104 : vector<1x12x32xbf16> to vector<12x32xbf16>
    %cst_87 = arith.constant dense<0.000000e+00> : vector<16x32xf32>
    %106 = tpu.matmul %103, %105, %cst_87 {dimension_numbers = #tpu.dot_dimension_numbers<[1], [0], [0], [1], [0, 0, 1, 1], [], []>} : vector<16x12xbf16>, vector<12x32xbf16>, vector<16x32xf32> -> vector<16x32xf32>
    %107 = arith.addf %99, %106 : vector<16x32xf32>
    %c2_i32_88 = arith.constant 2 : i32
    %108 = arith.addi %93, %c2_i32_88 : i32
    %c0_89 = arith.constant 0 : index
    %109 = arith.index_cast %108 : i32 to index
    %c0_90 = arith.constant 0 : index
    %c0_91 = arith.constant 0 : index
    %110 = vector.load %arg2[%c0_89, %109, %c0_90, %c0_91] : memref<1x18x16x12xbf16, #tpu.memory_space<vmem>>, vector<1x1x16x12xbf16>
    %111 = vector.shape_cast %110 : vector<1x1x16x12xbf16> to vector<16x12xbf16>
    %c2_92 = arith.constant 2 : index
    %c0_93 = arith.constant 0 : index
    %c0_94 = arith.constant 0 : index
    %112 = vector.load %arg3[%c2_92, %c0_93, %c0_94] : memref<3x12x32xbf16, #tpu.memory_space<vmem>>, vector<1x12x32xbf16>
    %113 = vector.shape_cast %112 : vector<1x12x32xbf16> to vector<12x32xbf16>
    %cst_95 = arith.constant dense<0.000000e+00> : vector<16x32xf32>
    %114 = tpu.matmul %111, %113, %cst_95 {dimension_numbers = #tpu.dot_dimension_numbers<[1], [0], [0], [1], [0, 0, 1, 1], [], []>} : vector<16x12xbf16>, vector<12x32xbf16>, vector<16x32xf32> -> vector<16x32xf32>
    %115 = arith.addf %107, %114 : vector<16x32xf32>
    %cst_96 = arith.constant dense<0.000000e+00> : vector<32xf32>
    %116 = vector.multi_reduction <add>, %115, %cst_96 [0] : vector<16x32xf32> to vector<32xf32>
    %117 = vector.shape_cast %116 : vector<32xf32> to vector<1x32xf32>
    %118 = arith.addf %88, %117 : vector<1x32xf32>
    %119 = arith.mulf %115, %115 : vector<16x32xf32>
    %cst_97 = arith.constant dense<0.000000e+00> : vector<32xf32>
    %120 = vector.multi_reduction <add>, %119, %cst_97 [0] : vector<16x32xf32> to vector<32xf32>
    %121 = vector.shape_cast %120 : vector<32xf32> to vector<1x32xf32>
    %122 = arith.addf %92, %121 : vector<1x32xf32>
    %c0_98 = arith.constant 0 : index
    %c0_99 = arith.constant 0 : index
    %c0_100 = arith.constant 0 : index
    %123 = vector.load %arg4[%c0_98, %c0_99, %c0_100] : memref<1x1x32xf32, #tpu.memory_space<vmem>>, vector<1x1x32xf32>
    %124 = vector.shape_cast %123 : vector<1x1x32xf32> to vector<1x32xf32>
    %125 = vector.shape_cast %118 : vector<1x32xf32> to vector<1x1x32xf32>
    tpu.vector_store %arg4[%c0_98, %c0_99, %c0_100], %125 {strides = array<i32>} : memref<1x1x32xf32, #tpu.memory_space<vmem>>, vector<1x1x32xf32>,
    %c0_101 = arith.constant 0 : index
    %c0_102 = arith.constant 0 : index
    %c0_103 = arith.constant 0 : index
    %126 = vector.load %arg5[%c0_101, %c0_102, %c0_103] : memref<1x1x32xf32, #tpu.memory_space<vmem>>, vector<1x1x32xf32>
    %127 = vector.shape_cast %126 : vector<1x1x32xf32> to vector<1x32xf32>
    %128 = vector.shape_cast %122 : vector<1x32xf32> to vector<1x1x32xf32>
    tpu.vector_store %arg5[%c0_101, %c0_102, %c0_103], %128 {strides = array<i32>} : memref<1x1x32xf32, #tpu.memory_space<vmem>>, vector<1x1x32xf32>,
    return
  }
  func.func @transform_0(%arg0: i32, %arg1: i32) -> (i32, i32, i32, i32) {
    %c0_i32 = arith.constant 0 : i32
    %c0_i32_0 = arith.constant 0 : i32
    %c0_i32_1 = arith.constant 0 : i32
    %c0_i32_2 = arith.constant 0 : i32
    return %arg0, %c0_i32, %c0_i32_0, %c0_i32_1 : i32, i32, i32, i32
  }
  func.func @transform_1(%arg0: i32, %arg1: i32) -> (i32, i32, i32) {
    %c0_i32 = arith.constant 0 : i32
    %c0_i32_0 = arith.constant 0 : i32
    %c0_i32_1 = arith.constant 0 : i32
    %c0_i32_2 = arith.constant 0 : i32
    return %c0_i32, %c0_i32_0, %c0_i32_1 : i32, i32, i32
  }
  func.func @transform_2(%arg0: i32, %arg1: i32) -> (i32, i32, i32) {
    %c4_i32 = arith.constant 4 : i32
    %0 = arith.muli %arg0, %c4_i32 : i32
    %1 = arith.addi %0, %arg1 : i32
    %c0_i32 = arith.constant 0 : i32
    %c0_i32_0 = arith.constant 0 : i32
    %c0_i32_1 = arith.constant 0 : i32
    return %1, %c0_i32, %c0_i32_0 : i32, i32, i32
  }
  func.func @transform_3(%arg0: i32, %arg1: i32) -> (i32, i32, i32) {
    %c4_i32 = arith.constant 4 : i32
    %0 = arith.muli %arg0, %c4_i32 : i32
    %1 = arith.addi %0, %arg1 : i32
    %c0_i32 = arith.constant 0 : i32
    %c0_i32_0 = arith.constant 0 : i32
    %c0_i32_1 = arith.constant 0 : i32
    return %1, %c0_i32, %c0_i32_0 : i32, i32, i32
  }
}

module attributes {stable_mosaic.version = 11 : i64} {
  func.func @_apply_kernel(%arg0: i32, %arg1: i32, %arg2: memref<1x18x16x12xbf16, #tpu.memory_space<vmem>>, %arg3: memref<3x12x32xbf16, #tpu.memory_space<vmem>>, %arg4: memref<3x1x32xf32, #tpu.memory_space<vmem>>, %arg5: memref<1x4x16x32xf32, #tpu.memory_space<vmem>>) attributes {dimension_semantics = [#tpu.dimension_semantics<parallel>, #tpu.dimension_semantics<parallel>], iteration_bounds = array<i64: 2, 4>, scalar_prefetch = 0 : i64, scratch_operands = 0 : i64, tpu.core_type = #tpu.core_type<tc>, window_params = [{transform_indices = @transform_0, window_bounds = array<i64: 1, 18, 16, 12>}, {pipeline_mode = #tpu.pipeline_mode<synchronous>, transform_indices = @transform_1, window_bounds = array<i64: 3, 12, 32>}, {pipeline_mode = #tpu.pipeline_mode<synchronous>, transform_indices = @transform_2, window_bounds = array<i64: 3, 1, 32>}, {transform_indices = @transform_3, window_bounds = array<i64: 1, 4, 16, 32>}]} {
    %c4_i32 = arith.constant 4 : i32
    %0 = arith.muli %arg1, %c4_i32 : i32
    %c0 = arith.constant 0 : index
    %c0_0 = arith.constant 0 : index
    %c0_1 = arith.constant 0 : index
    %1 = vector.load %arg4[%c0, %c0_0, %c0_1] : memref<3x1x32xf32, #tpu.memory_space<vmem>>, vector<1x1x32xf32>
    %2 = vector.shape_cast %1 : vector<1x1x32xf32> to vector<1x32xf32>
    %c1 = arith.constant 1 : index
    %c0_2 = arith.constant 0 : index
    %c0_3 = arith.constant 0 : index
    %3 = vector.load %arg4[%c1, %c0_2, %c0_3] : memref<3x1x32xf32, #tpu.memory_space<vmem>>, vector<1x1x32xf32>
    %4 = vector.shape_cast %3 : vector<1x1x32xf32> to vector<1x32xf32>
    %c2 = arith.constant 2 : index
    %c0_4 = arith.constant 0 : index
    %c0_5 = arith.constant 0 : index
    %5 = vector.load %arg4[%c2, %c0_4, %c0_5] : memref<3x1x32xf32, #tpu.memory_space<vmem>>, vector<1x1x32xf32>
    %6 = vector.shape_cast %5 : vector<1x1x32xf32> to vector<1x32xf32>
    %c0_i32 = arith.constant 0 : i32
    %7 = arith.addi %0, %c0_i32 : i32
    %c0_6 = arith.constant 0 : index
    %8 = arith.index_cast %7 : i32 to index
    %c0_7 = arith.constant 0 : index
    %c0_8 = arith.constant 0 : index
    %9 = vector.load %arg2[%c0_6, %8, %c0_7, %c0_8] : memref<1x18x16x12xbf16, #tpu.memory_space<vmem>>, vector<1x1x16x12xbf16>
    %10 = vector.shape_cast %9 : vector<1x1x16x12xbf16> to vector<16x12xbf16>
    %c0_9 = arith.constant 0 : index
    %c0_10 = arith.constant 0 : index
    %c0_11 = arith.constant 0 : index
    %11 = vector.load %arg3[%c0_9, %c0_10, %c0_11] : memref<3x12x32xbf16, #tpu.memory_space<vmem>>, vector<1x12x32xbf16>
    %12 = vector.shape_cast %11 : vector<1x12x32xbf16> to vector<12x32xbf16>
    %cst = arith.constant dense<0.000000e+00> : vector<16x32xf32>
    %13 = tpu.matmul %10, %12, %cst {dimension_numbers = #tpu.dot_dimension_numbers<[1], [0], [0], [1], [0, 0, 1, 1], [], []>} : vector<16x12xbf16>, vector<12x32xbf16>, vector<16x32xf32> -> vector<16x32xf32>
    %c1_i32 = arith.constant 1 : i32
    %14 = arith.addi %7, %c1_i32 : i32
    %c0_12 = arith.constant 0 : index
    %15 = arith.index_cast %14 : i32 to index
    %c0_13 = arith.constant 0 : index
    %c0_14 = arith.constant 0 : index
    %16 = vector.load %arg2[%c0_12, %15, %c0_13, %c0_14] : memref<1x18x16x12xbf16, #tpu.memory_space<vmem>>, vector<1x1x16x12xbf16>
    %17 = vector.shape_cast %16 : vector<1x1x16x12xbf16> to vector<16x12xbf16>
    %c1_15 = arith.constant 1 : index
    %c0_16 = arith.constant 0 : index
    %c0_17 = arith.constant 0 : index
    %18 = vector.load %arg3[%c1_15, %c0_16, %c0_17] : memref<3x12x32xbf16, #tpu.memory_space<vmem>>, vector<1x12x32xbf16>
    %19 = vector.shape_cast %18 : vector<1x12x32xbf16> to vector<12x32xbf16>
    %cst_18 = arith.constant dense<0.000000e+00> : vector<16x32xf32>
    %20 = tpu.matmul %17, %19, %cst_18 {dimension_numbers = #tpu.dot_dimension_numbers<[1], [0], [0], [1], [0, 0, 1, 1], [], []>} : vector<16x12xbf16>, vector<12x32xbf16>, vector<16x32xf32> -> vector<16x32xf32>
    %21 = arith.addf %13, %20 : vector<16x32xf32>
    %c2_i32 = arith.constant 2 : i32
    %22 = arith.addi %7, %c2_i32 : i32
    %c0_19 = arith.constant 0 : index
    %23 = arith.index_cast %22 : i32 to index
    %c0_20 = arith.constant 0 : index
    %c0_21 = arith.constant 0 : index
    %24 = vector.load %arg2[%c0_19, %23, %c0_20, %c0_21] : memref<1x18x16x12xbf16, #tpu.memory_space<vmem>>, vector<1x1x16x12xbf16>
    %25 = vector.shape_cast %24 : vector<1x1x16x12xbf16> to vector<16x12xbf16>
    %c2_22 = arith.constant 2 : index
    %c0_23 = arith.constant 0 : index
    %c0_24 = arith.constant 0 : index
    %26 = vector.load %arg3[%c2_22, %c0_23, %c0_24] : memref<3x12x32xbf16, #tpu.memory_space<vmem>>, vector<1x12x32xbf16>
    %27 = vector.shape_cast %26 : vector<1x12x32xbf16> to vector<12x32xbf16>
    %cst_25 = arith.constant dense<0.000000e+00> : vector<16x32xf32>
    %28 = tpu.matmul %25, %27, %cst_25 {dimension_numbers = #tpu.dot_dimension_numbers<[1], [0], [0], [1], [0, 0, 1, 1], [], []>} : vector<16x12xbf16>, vector<12x32xbf16>, vector<16x32xf32> -> vector<16x32xf32>
    %29 = arith.addf %21, %28 : vector<16x32xf32>
    %30 = vector.broadcast %2 : vector<1x32xf32> to vector<16x32xf32>
    %31 = arith.mulf %29, %30 : vector<16x32xf32>
    %32 = vector.broadcast %4 : vector<1x32xf32> to vector<16x32xf32>
    %33 = arith.addf %31, %32 : vector<16x32xf32>
    %cst_26 = arith.constant 0.000000e+00 : f32
    %34 = vector.broadcast %cst_26 : f32 to vector<16x32xf32>
    %35 = arith.cmpf oge, %33, %34 : vector<16x32xf32>
    %36 = vector.broadcast %6 : vector<1x32xf32> to vector<16x32xf32>
    %37 = arith.mulf %36, %33 : vector<16x32xf32>
    %38 = arith.select %35, %33, %37 : vector<16x32xi1>, vector<16x32xf32>
    %c0_27 = arith.constant 0 : index
    %c0_28 = arith.constant 0 : index
    %c0_29 = arith.constant 0 : index
    %c0_30 = arith.constant 0 : index
    %39 = vector.load %arg5[%c0_27, %c0_28, %c0_29, %c0_30] : memref<1x4x16x32xf32, #tpu.memory_space<vmem>>, vector<1x1x16x32xf32>
    %40 = vector.shape_cast %39 : vector<1x1x16x32xf32> to vector<16x32xf32>
    %41 = vector.shape_cast %38 : vector<16x32xf32> to vector<1x1x16x32xf32>
    tpu.vector_store %arg5[%c0_27, %c0_28, %c0_29, %c0_30], %41 {strides = array<i32>} : memref<1x4x16x32xf32, #tpu.memory_space<vmem>>, vector<1x1x16x32xf32>,
    %c1_i32_31 = arith.constant 1 : i32
    %42 = arith.addi %0, %c1_i32_31 : i32
    %c0_32 = arith.constant 0 : index
    %43 = arith.index_cast %42 : i32 to index
    %c0_33 = arith.constant 0 : index
    %c0_34 = arith.constant 0 : index
    %44 = vector.load %arg2[%c0_32, %43, %c0_33, %c0_34] : memref<1x18x16x12xbf16, #tpu.memory_space<vmem>>, vector<1x1x16x12xbf16>
    %45 = vector.shape_cast %44 : vector<1x1x16x12xbf16> to vector<16x12xbf16>
    %c0_35 = arith.constant 0 : index
    %c0_36 = arith.constant 0 : index
    %c0_37 = arith.constant 0 : index
    %46 = vector.load %arg3[%c0_35, %c0_36, %c0_37] : memref<3x12x32xbf16, #tpu.memory_space<vmem>>, vector<1x12x32xbf16>
    %47 = vector.shape_cast %46 : vector<1x12x32xbf16> to vector<12x32xbf16>
    %cst_38 = arith.constant dense<0.000000e+00> : vector<16x32xf32>
    %48 = tpu.matmul %45, %47, %cst_38 {dimension_numbers = #tpu.dot_dimension_numbers<[1], [0], [0], [1], [0, 0, 1, 1], [], []>} : vector<16x12xbf16>, vector<12x32xbf16>, vector<16x32xf32> -> vector<16x32xf32>
    %c1_i32_39 = arith.constant 1 : i32
    %49 = arith.addi %42, %c1_i32_39 : i32
    %c0_40 = arith.constant 0 : index
    %50 = arith.index_cast %49 : i32 to index
    %c0_41 = arith.constant 0 : index
    %c0_42 = arith.constant 0 : index
    %51 = vector.load %arg2[%c0_40, %50, %c0_41, %c0_42] : memref<1x18x16x12xbf16, #tpu.memory_space<vmem>>, vector<1x1x16x12xbf16>
    %52 = vector.shape_cast %51 : vector<1x1x16x12xbf16> to vector<16x12xbf16>
    %c1_43 = arith.constant 1 : index
    %c0_44 = arith.constant 0 : index
    %c0_45 = arith.constant 0 : index
    %53 = vector.load %arg3[%c1_43, %c0_44, %c0_45] : memref<3x12x32xbf16, #tpu.memory_space<vmem>>, vector<1x12x32xbf16>
    %54 = vector.shape_cast %53 : vector<1x12x32xbf16> to vector<12x32xbf16>
    %cst_46 = arith.constant dense<0.000000e+00> : vector<16x32xf32>
    %55 = tpu.matmul %52, %54, %cst_46 {dimension_numbers = #tpu.dot_dimension_numbers<[1], [0], [0], [1], [0, 0, 1, 1], [], []>} : vector<16x12xbf16>, vector<12x32xbf16>, vector<16x32xf32> -> vector<16x32xf32>
    %56 = arith.addf %48, %55 : vector<16x32xf32>
    %c2_i32_47 = arith.constant 2 : i32
    %57 = arith.addi %42, %c2_i32_47 : i32
    %c0_48 = arith.constant 0 : index
    %58 = arith.index_cast %57 : i32 to index
    %c0_49 = arith.constant 0 : index
    %c0_50 = arith.constant 0 : index
    %59 = vector.load %arg2[%c0_48, %58, %c0_49, %c0_50] : memref<1x18x16x12xbf16, #tpu.memory_space<vmem>>, vector<1x1x16x12xbf16>
    %60 = vector.shape_cast %59 : vector<1x1x16x12xbf16> to vector<16x12xbf16>
    %c2_51 = arith.constant 2 : index
    %c0_52 = arith.constant 0 : index
    %c0_53 = arith.constant 0 : index
    %61 = vector.load %arg3[%c2_51, %c0_52, %c0_53] : memref<3x12x32xbf16, #tpu.memory_space<vmem>>, vector<1x12x32xbf16>
    %62 = vector.shape_cast %61 : vector<1x12x32xbf16> to vector<12x32xbf16>
    %cst_54 = arith.constant dense<0.000000e+00> : vector<16x32xf32>
    %63 = tpu.matmul %60, %62, %cst_54 {dimension_numbers = #tpu.dot_dimension_numbers<[1], [0], [0], [1], [0, 0, 1, 1], [], []>} : vector<16x12xbf16>, vector<12x32xbf16>, vector<16x32xf32> -> vector<16x32xf32>
    %64 = arith.addf %56, %63 : vector<16x32xf32>
    %65 = vector.broadcast %2 : vector<1x32xf32> to vector<16x32xf32>
    %66 = arith.mulf %64, %65 : vector<16x32xf32>
    %67 = vector.broadcast %4 : vector<1x32xf32> to vector<16x32xf32>
    %68 = arith.addf %66, %67 : vector<16x32xf32>
    %cst_55 = arith.constant 0.000000e+00 : f32
    %69 = vector.broadcast %cst_55 : f32 to vector<16x32xf32>
    %70 = arith.cmpf oge, %68, %69 : vector<16x32xf32>
    %71 = vector.broadcast %6 : vector<1x32xf32> to vector<16x32xf32>
    %72 = arith.mulf %71, %68 : vector<16x32xf32>
    %73 = arith.select %70, %68, %72 : vector<16x32xi1>, vector<16x32xf32>
    %c0_56 = arith.constant 0 : index
    %c1_57 = arith.constant 1 : index
    %c0_58 = arith.constant 0 : index
    %c0_59 = arith.constant 0 : index
    %74 = vector.load %arg5[%c0_56, %c1_57, %c0_58, %c0_59] : memref<1x4x16x32xf32, #tpu.memory_space<vmem>>, vector<1x1x16x32xf32>
    %75 = vector.shape_cast %74 : vector<1x1x16x32xf32> to vector<16x32xf32>
    %76 = vector.shape_cast %73 : vector<16x32xf32> to vector<1x1x16x32xf32>
    tpu.vector_store %arg5[%c0_56, %c1_57, %c0_58, %c0_59], %76 {strides = array<i32>} : memref<1x4x16x32xf32, #tpu.memory_space<vmem>>, vector<1x1x16x32xf32>,
    %c2_i32_60 = arith.constant 2 : i32
    %77 = arith.addi %0, %c2_i32_60 : i32
    %c0_61 = arith.constant 0 : index
    %78 = arith.index_cast %77 : i32 to index
    %c0_62 = arith.constant 0 : index
    %c0_63 = arith.constant 0 : index
    %79 = vector.load %arg2[%c0_61, %78, %c0_62, %c0_63] : memref<1x18x16x12xbf16, #tpu.memory_space<vmem>>, vector<1x1x16x12xbf16>
    %80 = vector.shape_cast %79 : vector<1x1x16x12xbf16> to vector<16x12xbf16>
    %c0_64 = arith.constant 0 : index
    %c0_65 = arith.constant 0 : index
    %c0_66 = arith.constant 0 : index
    %81 = vector.load %arg3[%c0_64, %c0_65, %c0_66] : memref<3x12x32xbf16, #tpu.memory_space<vmem>>, vector<1x12x32xbf16>
    %82 = vector.shape_cast %81 : vector<1x12x32xbf16> to vector<12x32xbf16>
    %cst_67 = arith.constant dense<0.000000e+00> : vector<16x32xf32>
    %83 = tpu.matmul %80, %82, %cst_67 {dimension_numbers = #tpu.dot_dimension_numbers<[1], [0], [0], [1], [0, 0, 1, 1], [], []>} : vector<16x12xbf16>, vector<12x32xbf16>, vector<16x32xf32> -> vector<16x32xf32>
    %c1_i32_68 = arith.constant 1 : i32
    %84 = arith.addi %77, %c1_i32_68 : i32
    %c0_69 = arith.constant 0 : index
    %85 = arith.index_cast %84 : i32 to index
    %c0_70 = arith.constant 0 : index
    %c0_71 = arith.constant 0 : index
    %86 = vector.load %arg2[%c0_69, %85, %c0_70, %c0_71] : memref<1x18x16x12xbf16, #tpu.memory_space<vmem>>, vector<1x1x16x12xbf16>
    %87 = vector.shape_cast %86 : vector<1x1x16x12xbf16> to vector<16x12xbf16>
    %c1_72 = arith.constant 1 : index
    %c0_73 = arith.constant 0 : index
    %c0_74 = arith.constant 0 : index
    %88 = vector.load %arg3[%c1_72, %c0_73, %c0_74] : memref<3x12x32xbf16, #tpu.memory_space<vmem>>, vector<1x12x32xbf16>
    %89 = vector.shape_cast %88 : vector<1x12x32xbf16> to vector<12x32xbf16>
    %cst_75 = arith.constant dense<0.000000e+00> : vector<16x32xf32>
    %90 = tpu.matmul %87, %89, %cst_75 {dimension_numbers = #tpu.dot_dimension_numbers<[1], [0], [0], [1], [0, 0, 1, 1], [], []>} : vector<16x12xbf16>, vector<12x32xbf16>, vector<16x32xf32> -> vector<16x32xf32>
    %91 = arith.addf %83, %90 : vector<16x32xf32>
    %c2_i32_76 = arith.constant 2 : i32
    %92 = arith.addi %77, %c2_i32_76 : i32
    %c0_77 = arith.constant 0 : index
    %93 = arith.index_cast %92 : i32 to index
    %c0_78 = arith.constant 0 : index
    %c0_79 = arith.constant 0 : index
    %94 = vector.load %arg2[%c0_77, %93, %c0_78, %c0_79] : memref<1x18x16x12xbf16, #tpu.memory_space<vmem>>, vector<1x1x16x12xbf16>
    %95 = vector.shape_cast %94 : vector<1x1x16x12xbf16> to vector<16x12xbf16>
    %c2_80 = arith.constant 2 : index
    %c0_81 = arith.constant 0 : index
    %c0_82 = arith.constant 0 : index
    %96 = vector.load %arg3[%c2_80, %c0_81, %c0_82] : memref<3x12x32xbf16, #tpu.memory_space<vmem>>, vector<1x12x32xbf16>
    %97 = vector.shape_cast %96 : vector<1x12x32xbf16> to vector<12x32xbf16>
    %cst_83 = arith.constant dense<0.000000e+00> : vector<16x32xf32>
    %98 = tpu.matmul %95, %97, %cst_83 {dimension_numbers = #tpu.dot_dimension_numbers<[1], [0], [0], [1], [0, 0, 1, 1], [], []>} : vector<16x12xbf16>, vector<12x32xbf16>, vector<16x32xf32> -> vector<16x32xf32>
    %99 = arith.addf %91, %98 : vector<16x32xf32>
    %100 = vector.broadcast %2 : vector<1x32xf32> to vector<16x32xf32>
    %101 = arith.mulf %99, %100 : vector<16x32xf32>
    %102 = vector.broadcast %4 : vector<1x32xf32> to vector<16x32xf32>
    %103 = arith.addf %101, %102 : vector<16x32xf32>
    %cst_84 = arith.constant 0.000000e+00 : f32
    %104 = vector.broadcast %cst_84 : f32 to vector<16x32xf32>
    %105 = arith.cmpf oge, %103, %104 : vector<16x32xf32>
    %106 = vector.broadcast %6 : vector<1x32xf32> to vector<16x32xf32>
    %107 = arith.mulf %106, %103 : vector<16x32xf32>
    %108 = arith.select %105, %103, %107 : vector<16x32xi1>, vector<16x32xf32>
    %c0_85 = arith.constant 0 : index
    %c2_86 = arith.constant 2 : index
    %c0_87 = arith.constant 0 : index
    %c0_88 = arith.constant 0 : index
    %109 = vector.load %arg5[%c0_85, %c2_86, %c0_87, %c0_88] : memref<1x4x16x32xf32, #tpu.memory_space<vmem>>, vector<1x1x16x32xf32>
    %110 = vector.shape_cast %109 : vector<1x1x16x32xf32> to vector<16x32xf32>
    %111 = vector.shape_cast %108 : vector<16x32xf32> to vector<1x1x16x32xf32>
    tpu.vector_store %arg5[%c0_85, %c2_86, %c0_87, %c0_88], %111 {strides = array<i32>} : memref<1x4x16x32xf32, #tpu.memory_space<vmem>>, vector<1x1x16x32xf32>,
    %c3_i32 = arith.constant 3 : i32
    %112 = arith.addi %0, %c3_i32 : i32
    %c0_89 = arith.constant 0 : index
    %113 = arith.index_cast %112 : i32 to index
    %c0_90 = arith.constant 0 : index
    %c0_91 = arith.constant 0 : index
    %114 = vector.load %arg2[%c0_89, %113, %c0_90, %c0_91] : memref<1x18x16x12xbf16, #tpu.memory_space<vmem>>, vector<1x1x16x12xbf16>
    %115 = vector.shape_cast %114 : vector<1x1x16x12xbf16> to vector<16x12xbf16>
    %c0_92 = arith.constant 0 : index
    %c0_93 = arith.constant 0 : index
    %c0_94 = arith.constant 0 : index
    %116 = vector.load %arg3[%c0_92, %c0_93, %c0_94] : memref<3x12x32xbf16, #tpu.memory_space<vmem>>, vector<1x12x32xbf16>
    %117 = vector.shape_cast %116 : vector<1x12x32xbf16> to vector<12x32xbf16>
    %cst_95 = arith.constant dense<0.000000e+00> : vector<16x32xf32>
    %118 = tpu.matmul %115, %117, %cst_95 {dimension_numbers = #tpu.dot_dimension_numbers<[1], [0], [0], [1], [0, 0, 1, 1], [], []>} : vector<16x12xbf16>, vector<12x32xbf16>, vector<16x32xf32> -> vector<16x32xf32>
    %c1_i32_96 = arith.constant 1 : i32
    %119 = arith.addi %112, %c1_i32_96 : i32
    %c0_97 = arith.constant 0 : index
    %120 = arith.index_cast %119 : i32 to index
    %c0_98 = arith.constant 0 : index
    %c0_99 = arith.constant 0 : index
    %121 = vector.load %arg2[%c0_97, %120, %c0_98, %c0_99] : memref<1x18x16x12xbf16, #tpu.memory_space<vmem>>, vector<1x1x16x12xbf16>
    %122 = vector.shape_cast %121 : vector<1x1x16x12xbf16> to vector<16x12xbf16>
    %c1_100 = arith.constant 1 : index
    %c0_101 = arith.constant 0 : index
    %c0_102 = arith.constant 0 : index
    %123 = vector.load %arg3[%c1_100, %c0_101, %c0_102] : memref<3x12x32xbf16, #tpu.memory_space<vmem>>, vector<1x12x32xbf16>
    %124 = vector.shape_cast %123 : vector<1x12x32xbf16> to vector<12x32xbf16>
    %cst_103 = arith.constant dense<0.000000e+00> : vector<16x32xf32>
    %125 = tpu.matmul %122, %124, %cst_103 {dimension_numbers = #tpu.dot_dimension_numbers<[1], [0], [0], [1], [0, 0, 1, 1], [], []>} : vector<16x12xbf16>, vector<12x32xbf16>, vector<16x32xf32> -> vector<16x32xf32>
    %126 = arith.addf %118, %125 : vector<16x32xf32>
    %c2_i32_104 = arith.constant 2 : i32
    %127 = arith.addi %112, %c2_i32_104 : i32
    %c0_105 = arith.constant 0 : index
    %128 = arith.index_cast %127 : i32 to index
    %c0_106 = arith.constant 0 : index
    %c0_107 = arith.constant 0 : index
    %129 = vector.load %arg2[%c0_105, %128, %c0_106, %c0_107] : memref<1x18x16x12xbf16, #tpu.memory_space<vmem>>, vector<1x1x16x12xbf16>
    %130 = vector.shape_cast %129 : vector<1x1x16x12xbf16> to vector<16x12xbf16>
    %c2_108 = arith.constant 2 : index
    %c0_109 = arith.constant 0 : index
    %c0_110 = arith.constant 0 : index
    %131 = vector.load %arg3[%c2_108, %c0_109, %c0_110] : memref<3x12x32xbf16, #tpu.memory_space<vmem>>, vector<1x12x32xbf16>
    %132 = vector.shape_cast %131 : vector<1x12x32xbf16> to vector<12x32xbf16>
    %cst_111 = arith.constant dense<0.000000e+00> : vector<16x32xf32>
    %133 = tpu.matmul %130, %132, %cst_111 {dimension_numbers = #tpu.dot_dimension_numbers<[1], [0], [0], [1], [0, 0, 1, 1], [], []>} : vector<16x12xbf16>, vector<12x32xbf16>, vector<16x32xf32> -> vector<16x32xf32>
    %134 = arith.addf %126, %133 : vector<16x32xf32>
    %135 = vector.broadcast %2 : vector<1x32xf32> to vector<16x32xf32>
    %136 = arith.mulf %134, %135 : vector<16x32xf32>
    %137 = vector.broadcast %4 : vector<1x32xf32> to vector<16x32xf32>
    %138 = arith.addf %136, %137 : vector<16x32xf32>
    %cst_112 = arith.constant 0.000000e+00 : f32
    %139 = vector.broadcast %cst_112 : f32 to vector<16x32xf32>
    %140 = arith.cmpf oge, %138, %139 : vector<16x32xf32>
    %141 = vector.broadcast %6 : vector<1x32xf32> to vector<16x32xf32>
    %142 = arith.mulf %141, %138 : vector<16x32xf32>
    %143 = arith.select %140, %138, %142 : vector<16x32xi1>, vector<16x32xf32>
    %c0_113 = arith.constant 0 : index
    %c3 = arith.constant 3 : index
    %c0_114 = arith.constant 0 : index
    %c0_115 = arith.constant 0 : index
    %144 = vector.load %arg5[%c0_113, %c3, %c0_114, %c0_115] : memref<1x4x16x32xf32, #tpu.memory_space<vmem>>, vector<1x1x16x32xf32>
    %145 = vector.shape_cast %144 : vector<1x1x16x32xf32> to vector<16x32xf32>
    %146 = vector.shape_cast %143 : vector<16x32xf32> to vector<1x1x16x32xf32>
    tpu.vector_store %arg5[%c0_113, %c3, %c0_114, %c0_115], %146 {strides = array<i32>} : memref<1x4x16x32xf32, #tpu.memory_space<vmem>>, vector<1x1x16x32xf32>,
    return
  }
  func.func @transform_0(%arg0: i32, %arg1: i32) -> (i32, i32, i32, i32) {
    %c0_i32 = arith.constant 0 : i32
    %c0_i32_0 = arith.constant 0 : i32
    %c0_i32_1 = arith.constant 0 : i32
    %c0_i32_2 = arith.constant 0 : i32
    return %arg0, %c0_i32, %c0_i32_0, %c0_i32_1 : i32, i32, i32, i32
  }
  func.func @transform_1(%arg0: i32, %arg1: i32) -> (i32, i32, i32) {
    %c0_i32 = arith.constant 0 : i32
    %c0_i32_0 = arith.constant 0 : i32
    %c0_i32_1 = arith.constant 0 : i32
    %c0_i32_2 = arith.constant 0 : i32
    return %c0_i32, %c0_i32_0, %c0_i32_1 : i32, i32, i32
  }
  func.func @transform_2(%arg0: i32, %arg1: i32) -> (i32, i32, i32) {
    %c0_i32 = arith.constant 0 : i32
    %c0_i32_0 = arith.constant 0 : i32
    %c0_i32_1 = arith.constant 0 : i32
    %c0_i32_2 = arith.constant 0 : i32
    return %c0_i32, %c0_i32_0, %c0_i32_1 : i32, i32, i32
  }
  func.func @transform_3(%arg0: i32, %arg1: i32) -> (i32, i32, i32, i32) {
    %c0_i32 = arith.constant 0 : i32
    %c0_i32_0 = arith.constant 0 : i32
    %c0_i32_1 = arith.constant 0 : i32
    return %arg0, %arg1, %c0_i32, %c0_i32_0 : i32, i32, i32, i32
  }
}

</mosaic_0001>

<llo_original>
// kernel: tile.22
$region0: #{tile.22}
  #allocation0 [shape = 's32[1]{0}', space=sflag, size = 0x4, scoped, tag = 'scoped memory for tile.22']
  %s0 = inlined_call_operand.vmem [shape: f32[8], index: 0, kind: input, shape index: {}]
  %s1 = inlined_call_operand.vmem [shape: f32[4,8], index: 1, kind: output, shape index: {}]
  // Predicated region
  $region2: #{tile.22} parent=0 // pred_check
    _
  $region3: #{tile.22} parent=0 // pred_check_branch
    %3 = sbr.rel (0) target = $region5
  $region4: #{tile.22} parent=0 // pred_region
    _
  $region5: #{tile.22} parent=0 // pred_fallthru
    _
  %v4 = vld [vmem:[%s0] ss:$0 sm:$0xff]
  %5 = vst [vmem:[%s1] sm:$0xf] %v4

// kernel: tile.28
$region0: #{tile.28}
  %s0 = inlined_call_operand.vmem [shape: f32[4,8], index: 0, kind: input, shape index: {}]
  %s1 = inlined_call_operand.vmem [shape: f32[1,32], index: 1, kind: output, shape index: {}]
  $region1: #{tile.28} parent=0
    #allocation0 [shape = 'u8[4096]{0}', space=vmem, size = 0x1000, scoped, tag = 'scoped mem for output reshape']
    #allocation1 [shape = 'u8[4096]{0}', space=vmem, size = 0x1000, scoped, tag = 'scoped mem for input reshape']
    %s3 = sshll.u32 1, 4
    %s4 = ssub.s32 %s3, 1
    %v5 = vld [vmem:[%s0] sm:%s4]
    %6 = vst [vmem:[#allocation1] sm:%s4] %v5
    %v7 = vld [vmem:[#allocation1] sm:$0x1]
    %vm8 = vcmask 64512
    %9 = vst.msk [vmem:[#allocation0] sm:$0x1] %vm8, %v7
    %s10 = scalar_lea.vmem [#allocation1], 3
    %v11 = vld [vmem:[%s10] sm:$0x1]
    %12 = vrot.lane.b32.xlu0 %v11, 24
    %v13 = vpop.permute.xlu0 %12
    %vm14 = vcmask 261312
    %15 = vst.msk [vmem:[#allocation0] sm:$0x1] %vm14, %v13
    %s16 = scalar_lea.vmem [#allocation1], 2
    %v17 = vld [vmem:[%s16] sm:$0x1]
    %18 = vrot.lane.b32.xlu0 %v17, 16
    %v19 = vpop.permute.xlu0 %18
    %vm20 = vcmask 195712
    %21 = vst.msk [vmem:[#allocation0] sm:$0x1] %vm20, %v19
    %s22 = scalar_lea.vmem [#allocation1], 1
    %v23 = vld [vmem:[%s22] sm:$0x1]
    %24 = vrot.lane.b32.xlu0 %v23, 8
    %v25 = vpop.permute.xlu0 %24
    %vm26 = vcmask 130112
    %27 = vst.msk [vmem:[#allocation0] sm:$0x1] %vm26, %v25
    %s29 = sshll.u32 1, 1
    %s30 = ssub.s32 %s29, 1
    %v32 = vld [vmem:[#allocation0] sm:%s30]
    %s33 = sshll.u32 1, 1
    %s34 = ssub.s32 %s33, 1
    %35 = vst [vmem:[%s1] sm:%s34] %v32

// kernel: deconv_block_forward.2
$region0: #{deconv_block_forward.2}
  #allocation0 [shape = 'u32[]', space=smem, size = 0x4, offset = 0x4, fixed_abs, tag = 'smem constant byte address 0x4 - core index']
  #allocation1 [shape = 'u32[144,128]{1,0:T(1,128)}', space=vmem, size = 0x12000, scoped, tag = 'internal scratch']
  %s0 = inlined_call_operand.vmem [shape: bf16[2,18,16,12], index: 0, kind: input, shape index: {}]
  %s1 = inlined_call_operand.vmem [shape: bf16[3,12,32], index: 1, kind: input, shape index: {}]
  %s2 = inlined_call_operand.vmem [shape: f32[8,1,32], index: 2, kind: output, shape index: {0}]
  %s3 = inlined_call_operand.vmem [shape: f32[8,1,32], index: 3, kind: output, shape index: {1}]
  %4 = xla_tuple %s2, %s3
  %s5 = sld [smem:[#allocation0]]
  $region49: #{deconv_block_forward.2} parent=0
    _
  %s7 = ssub.s32 1, %s5
  %s8 = scalar_select 0, %s7, %s5
  loop: start=0, step=1, limit=10
  $region2: #{deconv_block_forward.2} parent=0 // loop_pre_header
    _
  $region3: #{deconv_block_forward.2} parent=0 // loop_header
    %s10 = sphi 0, %s14
    %p11 = scmp.ge.s32.totalorder %s10, 10
    %s17 = sphi 0, %s29
    %s18 = sphi 0, %s25
    %s19 = sphi 0, %s17
    %s20 = sphi 0, %s18
    %s21 = sphi 0, %s19
    %s22 = sphi 0, %s20
    %s32 = sphi 0, %s34
    %s35 = sphi 0, %s32
    %s36 = sphi 0, %s35
    %s52 = sphi 0, %s36
    %s56 = sphi 0, %s56
    %s58 = sphi 0, %s56
    %s59 = sphi 0, %s58
    %s73 = sphi 0, %s59
    %s83 = sphi 0, %s85
    %s86 = sphi 0, %s83
    %s87 = sphi 0, %s86
    %s103 = sphi 0, %s87
    %s113 = sphi 0, %s115
    %s116 = sphi 0, %s113
    %s117 = sphi 0, %s116
    %s133 = sphi 0, %s117
  $region4: #{deconv_block_forward.2} parent=0 // loop_header_branch
    %13 = sbr.rel (%p11) target = $region8
  $region5: #{deconv_block_forward.2} parent=0 // loop_body
    %s15 = ssub.s32 %s10, 1
    %s16 = ssub.s32 %s10, 2
    %s23 = sadd.s32 1, %s18
    %p24 = scmp.ge.s32.totalorder %s23, 4
    %s25 = scalar_select %p24, 0, %s23
    %s26 = sadd.s32 1, %s17
    %s27 = scalar_select %p24, %s26, %s17
    %p28 = scmp.ge.s32.totalorder %s27, 2
    %s29 = scalar_select %p28, 0, %s27
    %s30 = ssub.s32 %s17, %s29
    %p31 = scmp.eq.s32.totalorder %s30, 0
    %s33 = sadd.s32 %s32, 1
    %s34 = scalar_select %p31, %s32, %s33
    %p37 = pneg %p31
    %p38 = scmp.eq.s32.totalorder %s10, 7
    %p39 = por %p37, %p38
    %p40 = scmp.ne.s32.totalorder %s32, %s35
    %p41 = scmp.eq.s32.totalorder %s10, 0
    %p42 = por %p40, %p41
    %p43 = scmp.ne.s32.totalorder %s32, %s35
    %p44 = scmp.eq.s32.totalorder %s15, 7
    %p45 = por %p43, %p44
    %p46 = scmp.ne.s32.totalorder %s35, %s36
    %p47 = scmp.eq.s32.totalorder %s15, 0
    %p48 = por %p46, %p47
    %p49 = scmp.ne.s32.totalorder %s35, %s36
    %p50 = scmp.eq.s32.totalorder %s16, 7
    %p51 = por %p49, %p50
    %p53 = scmp.ne.s32.totalorder %s36, %s52
    %p54 = scmp.eq.s32.totalorder %s16, 0
    %p55 = por %p53, %p54
    %s57 = sadd.s32 %s56, 1
    %p60 = scmp.eq.s32.totalorder %s10, 7
    %p61 = scmp.ne.s32.totalorder %s56, %s58
    %p62 = scmp.eq.s32.totalorder %s10, 0
    %p63 = por %p61, %p62
    %p64 = scmp.ne.s32.totalorder %s56, %s58
    %p65 = scmp.eq.s32.totalorder %s15, 7
    %p66 = por %p64, %p65
    %p67 = scmp.ne.s32.totalorder %s58, %s59
    %p68 = scmp.eq.s32.totalorder %s15, 0
    %p69 = por %p67, %p68
    %p70 = scmp.ne.s32.totalorder %s58, %s59
    %p71 = scmp.eq.s32.totalorder %s16, 7
    %p72 = por %p70, %p71
    %p74 = scmp.ne.s32.totalorder %s59, %s73
    %p75 = scmp.eq.s32.totalorder %s16, 0
    %p76 = por %p74, %p75
    %s77 = smul.u32 %s17, 4
    %s78 = sadd.s32 %s77, %s18
    %s79 = smul.u32 %s29, 4
    %s80 = sadd.s32 %s79, %s25
    %s81 = ssub.s32 %s78, %s80
    %p82 = scmp.eq.s32.totalorder %s81, 0
    %s84 = sadd.s32 %s83, 1
    %s85 = scalar_select %p82, %s83, %s84
    %p88 = pneg %p82
    %p89 = scmp.eq.s32.totalorder %s10, 7
    %p90 = por %p88, %p89
    %p91 = scmp.ne.s32.totalorder %s83, %s86
    %p92 = scmp.eq.s32.totalorder %s10, 0
    %p93 = por %p91, %p92
    %p94 = scmp.ne.s32.totalorder %s83, %s86
    %p95 = scmp.eq.s32.totalorder %s15, 7
    %p96 = por %p94, %p95
    %p97 = scmp.ne.s32.totalorder %s86, %s87
    %p98 = scmp.eq.s32.totalorder %s15, 0
    %p99 = por %p97, %p98
    %p100 = scmp.ne.s32.totalorder %s86, %s87
    %p101 = scmp.eq.s32.totalorder %s16, 7
    %p102 = por %p100, %p101
    %p104 = scmp.ne.s32.totalorder %s87, %s103
    %p105 = scmp.eq.s32.totalorder %s16, 0
    %p106 = por %p104, %p105
    %s107 = smul.u32 %s17, 4
    %s108 = sadd.s32 %s107, %s18
    %s109 = smul.u32 %s29, 4
    %s110 = sadd.s32 %s109, %s25
    %s111 = ssub.s32 %s108, %s110
    %p112 = scmp.eq.s32.totalorder %s111, 0
    %s114 = sadd.s32 %s113, 1
    %s115 = scalar_select %p112, %s113, %s114
    %p118 = pneg %p112
    %p119 = scmp.eq.s32.totalorder %s10, 7
    %p120 = por %p118, %p119
    %p121 = scmp.ne.s32.totalorder %s113, %s116
    %p122 = scmp.eq.s32.totalorder %s10, 0
    %p123 = por %p121, %p122
    %p124 = scmp.ne.s32.totalorder %s113, %s116
    %p125 = scmp.eq.s32.totalorder %s15, 7
    %p126 = por %p124, %p125
    %p127 = scmp.ne.s32.totalorder %s116, %s117
    %p128 = scmp.eq.s32.totalorder %s15, 0
    %p129 = por %p127, %p128
    %p130 = scmp.ne.s32.totalorder %s116, %s117
    %p131 = scmp.eq.s32.totalorder %s16, 7
    %p132 = por %p130, %p131
    %p134 = scmp.ne.s32.totalorder %s117, %s133
    %p135 = scmp.eq.s32.totalorder %s16, 0
    %p136 = por %p134, %p135
    %p137 = scmp.le.s32.totalorder 1, %s10
    %p138 = scmp.lt.s32.totalorder %s10, 9
    %p139 = pnand %p137, %p138
    %p140 = pneg %p139
    // Predicated region
    $region9: #{deconv_block_forward.2} parent=5 // pred_check
      _
    $region10: #{deconv_block_forward.2} parent=5 // pred_check_branch
      %142 = sbr.rel (%p139) target = $region12
    $region11: #{deconv_block_forward.2} parent=5 // pred_region
      %s143 = ssub.s32 %s10, 1
      // Predicated region
      $region13: #{deconv_block_forward.2} parent=11 // pred_check
        %p144 = pneg %p69
      $region14: #{deconv_block_forward.2} parent=11 // pred_check_branch
        %146 = sbr.rel (%p144) target = $region16
      $region15: #{deconv_block_forward.2} parent=11 // pred_region
        _
      $region16: #{deconv_block_forward.2} parent=11 // pred_fallthru
        _
    $region12: #{deconv_block_forward.2} parent=5 // pred_fallthru
      _
    %p147 = scmp.lt.s32.totalorder %s10, 8
    // Predicated region
    $region17: #{deconv_block_forward.2} parent=5 // pred_check
      %p148 = pneg %p147
    $region18: #{deconv_block_forward.2} parent=5 // pred_check_branch
      %150 = sbr.rel (%p148) target = $region20
    $region19: #{deconv_block_forward.2} parent=5 // pred_region
      // Predicated region
      $region21: #{deconv_block_forward.2} parent=19 // pred_check
        %p151 = pneg %p42
      $region22: #{deconv_block_forward.2} parent=19 // pred_check_branch
        %153 = sbr.rel (%p151) target = $region24
      $region23: #{deconv_block_forward.2} parent=19 // pred_region
        %p154 = scmp.lt.s32.totalorder %s17, 1
        %s155 = scalar_select %p154, %s17, 1
        %s156 = smul.addr %s155, 36
        %s157 = smul.addr %s156, 4
        %s158 = scalar_lea.vmem %s0, %s157
      $region24: #{deconv_block_forward.2} parent=19 // pred_fallthru
        _
    $region20: #{deconv_block_forward.2} parent=5 // pred_fallthru
      _
    %p159 = scmp.le.s32.totalorder 1, %s10
    %p160 = scmp.lt.s32.totalorder %s10, 9
    %p161 = pnand %p159, %p160
    %p162 = pneg %p161
    // Predicated region
    $region25: #{deconv_block_forward.2} parent=5 // pred_check
      _
    $region26: #{deconv_block_forward.2} parent=5 // pred_check_branch
      %164 = sbr.rel (%p161) target = $region28
    $region27: #{deconv_block_forward.2} parent=5 // pred_region
      %s165 = ssub.s32 %s10, 1
      %p166 = scmp.lt.s32.totalorder %s19, 1
      %s167 = scalar_select %p166, %s19, 1
      %s168 = smul.addr %s167, 36
      %s169 = smul.addr %s168, 4
      %s170 = scalar_lea.vmem %s0, %s169
      %p171 = pneg %p48
      %p172 = pneg %p45
      %p173 = pneg %p69
      %p174 = pneg %p66
      %p175 = pneg %p99
      %p176 = pneg %p96
      %s177 = smul.u32 %s19, 4
      %s178 = sadd.s32 %s177, %s20
      %p179 = scmp.lt.s32.totalorder %s178, 7
      %s180 = scalar_select %p179, %s178, 7
      %s181 = scalar_lea.vmem %s2, %s180
      %p182 = pneg %p129
      %p183 = pneg %p126
      %s184 = smul.u32 %s19, 4
      %s185 = sadd.s32 %s184, %s20
      %p186 = scmp.lt.s32.totalorder %s185, 7
      %s187 = scalar_select %p186, %s185, 7
      %s188 = scalar_lea.vmem %s3, %s187
      %p189 = scmp.lt.s32.totalorder %s19, 1
      %s190 = scalar_select %p189, %s19, 1
      %s191 = smul.addr %s190, 36
      %s192 = smul.addr %s191, 4
      %s193 = scalar_lea.vmem %s0, %s192
      %s194 = smul.u32 %s19, 4
      %s195 = sadd.s32 %s194, %s20
      %p196 = scmp.lt.s32.totalorder %s195, 7
      %s197 = scalar_select %p196, %s195, 7
      %s198 = scalar_lea.vmem %s2, %s197
      %s199 = smul.u32 %s19, 4
      %s200 = sadd.s32 %s199, %s20
      %s201 = smul.u32 %s19, 4
      %s202 = sadd.s32 %s201, %s20
      %p203 = scmp.lt.s32.totalorder %s202, 7
      %s204 = scalar_select %p203, %s202, 7
      %s205 = scalar_lea.vmem %s3, %s204
      %s206 = smul.u32 %s19, 4
      %s207 = sadd.s32 %s206, %s20
      %s209 = smul.u32 %s20, 4
      %s210 = smul.u32 %s209, 2
      %s211 = smul.addr %s210, 4
      %s212 = scalar_lea.vmem %s193, %s211
      %v213 = vld [vmem:[%s212] sm:$0xf]
      %v214 = vld [vmem:[%s212 + $0x4] sm:$0xf]
      %v215 = vld [vmem:[%s1] sm:$0xf]
      %v216 = vld [vmem:[%s1 + $0x4] sm:$0x3]
      %s217 = sadd.s32 %s209, 1
      %s218 = smul.u32 %s217, 2
      %s219 = smul.addr %s218, 4
      %s220 = scalar_lea.vmem %s193, %s219
      %v221 = vld [vmem:[%s220] sm:$0xf]
      %v222 = vld [vmem:[%s220 + $0x4] sm:$0xf]
      %s223 = scalar_lea.vmem %s1, 8
      %v224 = vld [vmem:[%s223] sm:$0xf]
      %v225 = vld [vmem:[%s223 + $0x4] sm:$0x3]
      %v228 = vunpack.c.l.b16 %v221
      %v229 = vunpack.c.l.b16 %v222
      %v230 = vpack.c.b16 %v229, %v228
      %v233 = vunpack.c.l.b16 %v224
      %v234 = vunpack.c.l.b16 %v225
      %v235 = vpack.c.b16 %v234, %v233
      %vm236 = vcmask 97280
      %v238 = vsel %vm236, %v230, 0
      %vm240 = vcmask 1045504
      %v242 = vsel %vm240, %v235, 0
      %244 = vmatprep.subr.bf16.mxu0 0
      %245 = vmatpush1.bf16.msra.mxu0 0
      %246 = vmatprep.subr.bf16.mxu0 0
      %247 = vmatpush1.bf16.msra.mxu0 0
      %248 = vmatprep.subr.bf16.mxu0 0
      %249 = vmatpush1.bf16.msra.mxu0 0
      %250 = vmatprep.subr.bf16.mxu0 0
      %251 = vmatpush1.bf16.msra.mxu0 0
      %252 = vmatprep.subr.bf16.mxu0 0
      %253 = vmatpush1.bf16.msra.mxu0 0
      %254 = vmatprep.subr.bf16.mxu0 0
      %255 = vmatpush1.bf16.msra.mxu0 0
      %256 = vmatprep.subr.bf16.mxu0 0
      %257 = vmatpush1.bf16.msra.mxu0 0
      %258 = vmatprep.subr.bf16.mxu0 0
      %259 = vmatpush1.bf16.msra.mxu0 %v242
      %260 = vmatprep.subr.bf16.mxu0 0
      %261 = vmatpush2.bf16.msra.mxu0 0
      %262 = vmatprep.subr.bf16.mxu0 0
      %263 = vmatpush2.bf16.msra.mxu0 0
      %264 = vmatprep.subr.bf16.mxu0 0
      %265 = vmatpush2.bf16.msra.mxu0 0
      %266 = vmatprep.subr.bf16.mxu0 0
      %267 = vmatpush2.bf16.msra.mxu0 0
      %268 = vmatprep.subr.bf16.mxu0 0
      %269 = vmatpush2.bf16.msra.mxu0 0
      %270 = vmatprep.subr.bf16.mxu0 0
      %271 = vmatpush2.bf16.msra.mxu0 0
      %272 = vmatprep.subr.bf16.mxu0 0
      %273 = vmatpush2.bf16.msra.mxu0 0
      %274 = vmatprep.subr.bf16.mxu0 0
      %275 = vmatpush2.bf16.msra.mxu0 0
      %276 = vmatprep.mubr.bf16.mxu0 0
      %277 = vmatmul.mubr.bf16.gmra.mxu0 %v238
      %v278 = vpop.f32.mrf.mxu0
      %v279 = vadd.f32 0.0, %v278
      %v280 = vpop.f32.mrf.mxu0
      %v281 = vpop.f32.mrf.mxu0
      %v282 = vadd.f32 0.0, %v281
      %v283 = vpop.f32.mrf.mxu0
      %284 = vdwg.mxu0
      %v287 = vunpack.c.l.b16 %v213
      %v288 = vunpack.c.l.b16 %v214
      %v289 = vpack.c.b16 %v288, %v287
      %v292 = vunpack.c.l.b16 %v215
      %v293 = vunpack.c.l.b16 %v216
      %v294 = vpack.c.b16 %v293, %v292
      %v296 = vsel %vm236, %v289, 0
      %v299 = vsel %vm240, %v294, 0
      %301 = vmatprep.subr.bf16.mxu0 0
      %302 = vmatpush1.bf16.msra.mxu0 0
      %303 = vmatprep.subr.bf16.mxu0 0
      %304 = vmatpush1.bf16.msra.mxu0 0
      %305 = vmatprep.subr.bf16.mxu0 0
      %306 = vmatpush1.bf16.msra.mxu0 0
      %307 = vmatprep.subr.bf16.mxu0 0
      %308 = vmatpush1.bf16.msra.mxu0 0
      %309 = vmatprep.subr.bf16.mxu0 0
      %310 = vmatpush1.bf16.msra.mxu0 0
      %311 = vmatprep.subr.bf16.mxu0 0
      %312 = vmatpush1.bf16.msra.mxu0 0
      %313 = vmatprep.subr.bf16.mxu0 0
      %314 = vmatpush1.bf16.msra.mxu0 0
      %315 = vmatprep.subr.bf16.mxu0 0
      %316 = vmatpush1.bf16.msra.mxu0 %v299
      %317 = vmatprep.subr.bf16.mxu0 0
      %318 = vmatpush2.bf16.msra.mxu0 0
      %319 = vmatprep.subr.bf16.mxu0 0
      %320 = vmatpush2.bf16.msra.mxu0 0
      %321 = vmatprep.subr.bf16.mxu0 0
      %322 = vmatpush2.bf16.msra.mxu0 0
      %323 = vmatprep.subr.bf16.mxu0 0
      %324 = vmatpush2.bf16.msra.mxu0 0
      %325 = vmatprep.subr.bf16.mxu0 0
      %326 = vmatpush2.bf16.msra.mxu0 0
      %327 = vmatprep.subr.bf16.mxu0 0
      %328 = vmatpush2.bf16.msra.mxu0 0
      %329 = vmatprep.subr.bf16.mxu0 0
      %330 = vmatpush2.bf16.msra.mxu0 0
      %331 = vmatprep.subr.bf16.mxu0 0
      %332 = vmatpush2.bf16.msra.mxu0 0
      %333 = vmatprep.mubr.bf16.mxu0 0
      %334 = vmatmul.mubr.bf16.gmra.mxu0 %v296
      %v335 = vpop.f32.mrf.mxu0
      %v336 = vadd.f32 %v279, %v335
      %v337 = vpop.f32.mrf.mxu0
      %v338 = vpop.f32.mrf.mxu0
      %v339 = vadd.f32 %v282, %v338
      %v340 = vpop.f32.mrf.mxu0
      %341 = vdwg.mxu0
      %s342 = sadd.s32 %s209, 2
      %s343 = smul.u32 %s342, 2
      %s344 = smul.addr %s343, 4
      %s345 = scalar_lea.vmem %s193, %s344
      %v346 = vld [vmem:[%s345] sm:$0xf]
      %v347 = vld [vmem:[%s345 + $0x4] sm:$0xf]
      %s348 = scalar_lea.vmem %s1, 16
      %v349 = vld [vmem:[%s348] sm:$0xf]
      %v350 = vld [vmem:[%s348 + $0x4] sm:$0x3]
      %v353 = vunpack.c.l.b16 %v346
      %v354 = vunpack.c.l.b16 %v347
      %v355 = vpack.c.b16 %v354, %v353
      %v358 = vunpack.c.l.b16 %v349
      %v359 = vunpack.c.l.b16 %v350
      %v360 = vpack.c.b16 %v359, %v358
      %v362 = vsel %vm236, %v355, 0
      %v365 = vsel %vm240, %v360, 0
      %367 = vmatprep.subr.bf16.mxu0 0
      %368 = vmatpush1.bf16.msra.mxu0 0
      %369 = vmatprep.subr.bf16.mxu0 0
      %370 = vmatpush1.bf16.msra.mxu0 0
      %371 = vmatprep.subr.bf16.mxu0 0
      %372 = vmatpush1.bf16.msra.mxu0 0
      %373 = vmatprep.subr.bf16.mxu0 0
      %374 = vmatpush1.bf16.msra.mxu0 0
      %375 = vmatprep.subr.bf16.mxu0 0
      %376 = vmatpush1.bf16.msra.mxu0 0
      %377 = vmatprep.subr.bf16.mxu0 0
      %378 = vmatpush1.bf16.msra.mxu0 0
      %379 = vmatprep.subr.bf16.mxu0 0
      %380 = vmatpush1.bf16.msra.mxu0 0
      %381 = vmatprep.subr.bf16.mxu0 0
      %382 = vmatpush1.bf16.msra.mxu0 %v365
      %383 = vmatprep.subr.bf16.mxu0 0
      %384 = vmatpush2.bf16.msra.mxu0 0
      %385 = vmatprep.subr.bf16.mxu0 0
      %386 = vmatpush2.bf16.msra.mxu0 0
      %387 = vmatprep.subr.bf16.mxu0 0
      %388 = vmatpush2.bf16.msra.mxu0 0
      %389 = vmatprep.subr.bf16.mxu0 0
      %390 = vmatpush2.bf16.msra.mxu0 0
      %391 = vmatprep.subr.bf16.mxu0 0
      %392 = vmatpush2.bf16.msra.mxu0 0
      %393 = vmatprep.subr.bf16.mxu0 0
      %394 = vmatpush2.bf16.msra.mxu0 0
      %395 = vmatprep.subr.bf16.mxu0 0
      %396 = vmatpush2.bf16.msra.mxu0 0
      %397 = vmatprep.subr.bf16.mxu0 0
      %398 = vmatpush2.bf16.msra.mxu0 0
      %399 = vmatprep.mubr.bf16.mxu0 0
      %400 = vmatmul.mubr.bf16.gmra.mxu0 %v362
      %v401 = vpop.f32.mrf.mxu0
      %v402 = vadd.f32 0.0, %v401
      %v403 = vpop.f32.mrf.mxu0
      %v404 = vpop.f32.mrf.mxu0
      %v405 = vadd.f32 0.0, %v404
      %v406 = vpop.f32.mrf.mxu0
      %407 = vdwg.mxu0
      %v408 = vadd.f32 %v336, %v402
      %v409 = vadd.f32 %v339, %v405
      %vm410 = vcmask 261120
      %v411 = vsel %vm410, %v408, 0.0
      %v412 = vsel %vm410, %v409, 0.0
      %v413 = vadd.f32 %v411, %v412
      %v414 = vrot.slane %v413, 4
      %v415 = vadd.f32 %v413, %v414
      %v416 = vrot.slane %v415, 2
      %v417 = vadd.f32 %v415, %v416
      %v418 = vrot.slane %v417, 1
      %v419 = vadd.f32 %v417, %v418
      %v420 = vadd.f32 %v419, 0.0
      %v421 = vmul.f32 %v408, %v408
      %v422 = vmul.f32 %v409, %v409
      %v423 = vsel %vm410, %v421, 0.0
      %v424 = vsel %vm410, %v422, 0.0
      %v425 = vadd.f32 %v423, %v424
      %v426 = vrot.slane %v425, 4
      %v427 = vadd.f32 %v425, %v426
      %v428 = vrot.slane %v427, 2
      %v429 = vadd.f32 %v427, %v428
      %v430 = vrot.slane %v429, 1
      %v431 = vadd.f32 %v429, %v430
      %v432 = vadd.f32 %v431, 0.0
      %433 = vmatprep.subr.bf16.mxu0 0
      %434 = vmatpush1.bf16.msra.mxu0 0
      %435 = vmatprep.subr.bf16.mxu0 0
      %436 = vmatpush1.bf16.msra.mxu0 0
      %437 = vmatprep.subr.bf16.mxu0 0
      %438 = vmatpush1.bf16.msra.mxu0 0
      %439 = vmatprep.subr.bf16.mxu0 0
      %440 = vmatpush1.bf16.msra.mxu0 0
      %441 = vmatprep.subr.bf16.mxu0 0
      %442 = vmatpush1.bf16.msra.mxu0 0
      %443 = vmatprep.subr.bf16.mxu0 0
      %444 = vmatpush1.bf16.msra.mxu0 0
      %445 = vmatprep.subr.bf16.mxu0 0
      %446 = vmatpush1.bf16.msra.mxu0 0
      %447 = vmatprep.subr.bf16.mxu0 0
      %448 = vmatpush1.bf16.msra.mxu0 %v242
      %449 = vmatprep.subr.bf16.mxu0 0
      %450 = vmatpush2.bf16.msra.mxu0 0
      %451 = vmatprep.subr.bf16.mxu0 0
      %452 = vmatpush2.bf16.msra.mxu0 0
      %453 = vmatprep.subr.bf16.mxu0 0
      %454 = vmatpush2.bf16.msra.mxu0 0
      %455 = vmatprep.subr.bf16.mxu0 0
      %456 = vmatpush2.bf16.msra.mxu0 0
      %457 = vmatprep.subr.bf16.mxu0 0
      %458 = vmatpush2.bf16.msra.mxu0 0
      %459 = vmatprep.subr.bf16.mxu0 0
      %460 = vmatpush2.bf16.msra.mxu0 0
      %461 = vmatprep.subr.bf16.mxu0 0
      %462 = vmatpush2.bf16.msra.mxu0 0
      %463 = vmatprep.subr.bf16.mxu0 0
      %464 = vmatpush2.bf16.msra.mxu0 0
      %465 = vmatprep.mubr.bf16.mxu0 0
      %466 = vmatmul.mubr.bf16.gmra.mxu0 %v362
      %v467 = vpop.f32.mrf.mxu0
      %v468 = vadd.f32 0.0, %v467
      %v469 = vpop.f32.mrf.mxu0
      %v470 = vpop.f32.mrf.mxu0
      %v471 = vadd.f32 0.0, %v470
      %v472 = vpop.f32.mrf.mxu0
      %473 = vdwg.mxu0
      %474 = vmatprep.subr.bf16.mxu0 0
      %475 = vmatpush1.bf16.msra.mxu0 0
      %476 = vmatprep.subr.bf16.mxu0 0
      %477 = vmatpush1.bf16.msra.mxu0 0
      %478 = vmatprep.subr.bf16.mxu0 0
      %479 = vmatpush1.bf16.msra.mxu0 0
      %480 = vmatprep.subr.bf16.mxu0 0
      %481 = vmatpush1.bf16.msra.mxu0 0
      %482 = vmatprep.subr.bf16.mxu0 0
      %483 = vmatpush1.bf16.msra.mxu0 0
      %484 = vmatprep.subr.bf16.mxu0 0
      %485 = vmatpush1.bf16.msra.mxu0 0
      %486 = vmatprep.subr.bf16.mxu0 0
      %487 = vmatpush1.bf16.msra.mxu0 0
      %488 = vmatprep.subr.bf16.mxu0 0
      %489 = vmatpush1.bf16.msra.mxu0 %v299
      %490 = vmatprep.subr.bf16.mxu0 0
      %491 = vmatpush2.bf16.msra.mxu0 0
      %492 = vmatprep.subr.bf16.mxu0 0
      %493 = vmatpush2.bf16.msra.mxu0 0
      %494 = vmatprep.subr.bf16.mxu0 0
      %495 = vmatpush2.bf16.msra.mxu0 0
      %496 = vmatprep.subr.bf16.mxu0 0
      %497 = vmatpush2.bf16.msra.mxu0 0
      %498 = vmatprep.subr.bf16.mxu0 0
      %499 = vmatpush2.bf16.msra.mxu0 0
      %500 = vmatprep.subr.bf16.mxu0 0
      %501 = vmatpush2.bf16.msra.mxu0 0
      %502 = vmatprep.subr.bf16.mxu0 0
      %503 = vmatpush2.bf16.msra.mxu0 0
      %504 = vmatprep.subr.bf16.mxu0 0
      %505 = vmatpush2.bf16.msra.mxu0 0
      %506 = vmatprep.mubr.bf16.mxu0 0
      %507 = vmatmul.mubr.bf16.gmra.mxu0 %v238
      %v508 = vpop.f32.mrf.mxu0
      %v509 = vadd.f32 %v468, %v508
      %v510 = vpop.f32.mrf.mxu0
      %v511 = vpop.f32.mrf.mxu0
      %v512 = vadd.f32 %v471, %v511
      %v513 = vpop.f32.mrf.mxu0
      %514 = vdwg.mxu0
      %s515 = sadd.s32 %s209, 3
      %s516 = smul.u32 %s515, 2
      %s517 = smul.addr %s516, 4
      %s518 = scalar_lea.vmem %s193, %s517
      %v519 = vld [vmem:[%s518] sm:$0xf]
      %v520 = vld [vmem:[%s518 + $0x4] sm:$0xf]
      %v523 = vunpack.c.l.b16 %v519
      %v524 = vunpack.c.l.b16 %v520
      %v525 = vpack.c.b16 %v524, %v523
      %v527 = vsel %vm236, %v525, 0
      %529 = vmatprep.subr.bf16.mxu0 0
      %530 = vmatpush1.bf16.msra.mxu0 0
      %531 = vmatprep.subr.bf16.mxu0 0
      %532 = vmatpush1.bf16.msra.mxu0 0
      %533 = vmatprep.subr.bf16.mxu0 0
      %534 = vmatpush1.bf16.msra.mxu0 0
      %535 = vmatprep.subr.bf16.mxu0 0
      %536 = vmatpush1.bf16.msra.mxu0 0
      %537 = vmatprep.subr.bf16.mxu0 0
      %538 = vmatpush1.bf16.msra.mxu0 0
      %539 = vmatprep.subr.bf16.mxu0 0
      %540 = vmatpush1.bf16.msra.mxu0 0
      %541 = vmatprep.subr.bf16.mxu0 0
      %542 = vmatpush1.bf16.msra.mxu0 0
      %543 = vmatprep.subr.bf16.mxu0 0
      %544 = vmatpush1.bf16.msra.mxu0 %v365
      %545 = vmatprep.subr.bf16.mxu0 0
      %546 = vmatpush2.bf16.msra.mxu0 0
      %547 = vmatprep.subr.bf16.mxu0 0
      %548 = vmatpush2.bf16.msra.mxu0 0
      %549 = vmatprep.subr.bf16.mxu0 0
      %550 = vmatpush2.bf16.msra.mxu0 0
      %551 = vmatprep.subr.bf16.mxu0 0
      %552 = vmatpush2.bf16.msra.mxu0 0
      %553 = vmatprep.subr.bf16.mxu0 0
      %554 = vmatpush2.bf16.msra.mxu0 0
      %555 = vmatprep.subr.bf16.mxu0 0
      %556 = vmatpush2.bf16.msra.mxu0 0
      %557 = vmatprep.subr.bf16.mxu0 0
      %558 = vmatpush2.bf16.msra.mxu0 0
      %559 = vmatprep.subr.bf16.mxu0 0
      %560 = vmatpush2.bf16.msra.mxu0 0
      %561 = vmatprep.mubr.bf16.mxu0 0
      %562 = vmatmul.mubr.bf16.gmra.mxu0 %v527
      %v563 = vpop.f32.mrf.mxu0
      %v564 = vadd.f32 0.0, %v563
      %v565 = vpop.f32.mrf.mxu0
      %v566 = vpop.f32.mrf.mxu0
      %v567 = vadd.f32 0.0, %v566
      %v568 = vpop.f32.mrf.mxu0
      %569 = vdwg.mxu0
      %v570 = vadd.f32 %v509, %v564
      %v571 = vadd.f32 %v512, %v567
      %v572 = vsel %vm410, %v570, 0.0
      %v573 = vsel %vm410, %v571, 0.0
      %v574 = vadd.f32 %v572, %v573
      %v575 = vrot.slane %v574, 4
      %v576 = vadd.f32 %v574, %v575
      %v577 = vrot.slane %v576, 2
      %v578 = vadd.f32 %v576, %v577
      %v579 = vrot.slane %v578, 1
      %v580 = vadd.f32 %v578, %v579
      %v581 = vadd.f32 %v420, %v580
      %v582 = vmul.f32 %v570, %v570
      %v583 = vmul.f32 %v571, %v571
      %v584 = vsel %vm410, %v582, 0.0
      %v585 = vsel %vm410, %v583, 0.0
      %v586 = vadd.f32 %v584, %v585
      %v587 = vrot.slane %v586, 4
      %v588 = vadd.f32 %v586, %v587
      %v589 = vrot.slane %v588, 2
      %v590 = vadd.f32 %v588, %v589
      %v591 = vrot.slane %v590, 1
      %v592 = vadd.f32 %v590, %v591
      %v593 = vadd.f32 %v432, %v592
      %594 = vmatprep.subr.bf16.mxu0 0
      %595 = vmatpush1.bf16.msra.mxu0 0
      %596 = vmatprep.subr.bf16.mxu0 0
      %597 = vmatpush1.bf16.msra.mxu0 0
      %598 = vmatprep.subr.bf16.mxu0 0
      %599 = vmatpush1.bf16.msra.mxu0 0
      %600 = vmatprep.subr.bf16.mxu0 0
      %601 = vmatpush1.bf16.msra.mxu0 0
      %602 = vmatprep.subr.bf16.mxu0 0
      %603 = vmatpush1.bf16.msra.mxu0 0
      %604 = vmatprep.subr.bf16.mxu0 0
      %605 = vmatpush1.bf16.msra.mxu0 0
      %606 = vmatprep.subr.bf16.mxu0 0
      %607 = vmatpush1.bf16.msra.mxu0 0
      %608 = vmatprep.subr.bf16.mxu0 0
      %609 = vmatpush1.bf16.msra.mxu0 %v242
      %610 = vmatprep.subr.bf16.mxu0 0
      %611 = vmatpush2.bf16.msra.mxu0 0
      %612 = vmatprep.subr.bf16.mxu0 0
      %613 = vmatpush2.bf16.msra.mxu0 0
      %614 = vmatprep.subr.bf16.mxu0 0
      %615 = vmatpush2.bf16.msra.mxu0 0
      %616 = vmatprep.subr.bf16.mxu0 0
      %617 = vmatpush2.bf16.msra.mxu0 0
      %618 = vmatprep.subr.bf16.mxu0 0
      %619 = vmatpush2.bf16.msra.mxu0 0
      %620 = vmatprep.subr.bf16.mxu0 0
      %621 = vmatpush2.bf16.msra.mxu0 0
      %622 = vmatprep.subr.bf16.mxu0 0
      %623 = vmatpush2.bf16.msra.mxu0 0
      %624 = vmatprep.subr.bf16.mxu0 0
      %625 = vmatpush2.bf16.msra.mxu0 0
      %626 = vmatprep.mubr.bf16.mxu0 0
      %627 = vmatmul.mubr.bf16.gmra.mxu0 %v527
      %v628 = vpop.f32.mrf.mxu0
      %v629 = vadd.f32 0.0, %v628
      %v630 = vpop.f32.mrf.mxu0
      %v631 = vpop.f32.mrf.mxu0
      %v632 = vadd.f32 0.0, %v631
      %v633 = vpop.f32.mrf.mxu0
      %634 = vdwg.mxu0
      %635 = vmatprep.subr.bf16.mxu0 0
      %636 = vmatpush1.bf16.msra.mxu0 0
      %637 = vmatprep.subr.bf16.mxu0 0
      %638 = vmatpush1.bf16.msra.mxu0 0
      %639 = vmatprep.subr.bf16.mxu0 0
      %640 = vmatpush1.bf16.msra.mxu0 0
      %641 = vmatprep.subr.bf16.mxu0 0
      %642 = vmatpush1.bf16.msra.mxu0 0
      %643 = vmatprep.subr.bf16.mxu0 0
      %644 = vmatpush1.bf16.msra.mxu0 0
      %645 = vmatprep.subr.bf16.mxu0 0
      %646 = vmatpush1.bf16.msra.mxu0 0
      %647 = vmatprep.subr.bf16.mxu0 0
      %648 = vmatpush1.bf16.msra.mxu0 0
      %649 = vmatprep.subr.bf16.mxu0 0
      %650 = vmatpush1.bf16.msra.mxu0 %v299
      %651 = vmatprep.subr.bf16.mxu0 0
      %652 = vmatpush2.bf16.msra.mxu0 0
      %653 = vmatprep.subr.bf16.mxu0 0
      %654 = vmatpush2.bf16.msra.mxu0 0
      %655 = vmatprep.subr.bf16.mxu0 0
      %656 = vmatpush2.bf16.msra.mxu0 0
      %657 = vmatprep.subr.bf16.mxu0 0
      %658 = vmatpush2.bf16.msra.mxu0 0
      %659 = vmatprep.subr.bf16.mxu0 0
      %660 = vmatpush2.bf16.msra.mxu0 0
      %661 = vmatprep.subr.bf16.mxu0 0
      %662 = vmatpush2.bf16.msra.mxu0 0
      %663 = vmatprep.subr.bf16.mxu0 0
      %664 = vmatpush2.bf16.msra.mxu0 0
      %665 = vmatprep.subr.bf16.mxu0 0
      %666 = vmatpush2.bf16.msra.mxu0 0
      %667 = vmatprep.mubr.bf16.mxu0 0
      %668 = vmatmul.mubr.bf16.gmra.mxu0 %v362
      %v669 = vpop.f32.mrf.mxu0
      %v670 = vadd.f32 %v629, %v669
      %v671 = vpop.f32.mrf.mxu0
      %v672 = vpop.f32.mrf.mxu0
      %v673 = vadd.f32 %v632, %v672
      %v674 = vpop.f32.mrf.mxu0
      %675 = vdwg.mxu0
      %s676 = sadd.s32 %s209, 4
      %s677 = smul.u32 %s676, 2
      %s678 = smul.addr %s677, 4
      %s679 = scalar_lea.vmem %s193, %s678
      %v680 = vld [vmem:[%s679] sm:$0xf]
      %v681 = vld [vmem:[%s679 + $0x4] sm:$0xf]
      %v684 = vunpack.c.l.b16 %v680
      %v685 = vunpack.c.l.b16 %v681
      %v686 = vpack.c.b16 %v685, %v684
      %v688 = vsel %vm236, %v686, 0
      %690 = vmatprep.subr.bf16.mxu0 0
      %691 = vmatpush1.bf16.msra.mxu0 0
      %692 = vmatprep.subr.bf16.mxu0 0
      %693 = vmatpush1.bf16.msra.mxu0 0
      %694 = vmatprep.subr.bf16.mxu0 0
      %695 = vmatpush1.bf16.msra.mxu0 0
      %696 = vmatprep.subr.bf16.mxu0 0
      %697 = vmatpush1.bf16.msra.mxu0 0
      %698 = vmatprep.subr.bf16.mxu0 0
      %699 = vmatpush1.bf16.msra.mxu0 0
      %700 = vmatprep.subr.bf16.mxu0 0
      %701 = vmatpush1.bf16.msra.mxu0 0
      %702 = vmatprep.subr.bf16.mxu0 0
      %703 = vmatpush1.bf16.msra.mxu0 0
      %704 = vmatprep.subr.bf16.mxu0 0
      %705 = vmatpush1.bf16.msra.mxu0 %v365
      %706 = vmatprep.subr.bf16.mxu0 0
      %707 = vmatpush2.bf16.msra.mxu0 0
      %708 = vmatprep.subr.bf16.mxu0 0
      %709 = vmatpush2.bf16.msra.mxu0 0
      %710 = vmatprep.subr.bf16.mxu0 0
      %711 = vmatpush2.bf16.msra.mxu0 0
      %712 = vmatprep.subr.bf16.mxu0 0
      %713 = vmatpush2.bf16.msra.mxu0 0
      %714 = vmatprep.subr.bf16.mxu0 0
      %715 = vmatpush2.bf16.msra.mxu0 0
      %716 = vmatprep.subr.bf16.mxu0 0
      %717 = vmatpush2.bf16.msra.mxu0 0
      %718 = vmatprep.subr.bf16.mxu0 0
      %719 = vmatpush2.bf16.msra.mxu0 0
      %720 = vmatprep.subr.bf16.mxu0 0
      %721 = vmatpush2.bf16.msra.mxu0 0
      %722 = vmatprep.mubr.bf16.mxu0 0
      %723 = vmatmul.mubr.bf16.gmra.mxu0 %v688
      %v724 = vpop.f32.mrf.mxu0
      %v725 = vadd.f32 0.0, %v724
      %v726 = vpop.f32.mrf.mxu0
      %v727 = vpop.f32.mrf.mxu0
      %v728 = vadd.f32 0.0, %v727
      %v729 = vpop.f32.mrf.mxu0
      %730 = vdwg.mxu0
      %v731 = vadd.f32 %v670, %v725
      %v732 = vadd.f32 %v673, %v728
      %v733 = vsel %vm410, %v731, 0.0
      %v734 = vsel %vm410, %v732, 0.0
      %v735 = vadd.f32 %v733, %v734
      %v736 = vrot.slane %v735, 4
      %v737 = vadd.f32 %v735, %v736
      %v738 = vrot.slane %v737, 2
      %v739 = vadd.f32 %v737, %v738
      %v740 = vrot.slane %v739, 1
      %v741 = vadd.f32 %v739, %v740
      %v742 = vadd.f32 %v581, %v741
      %v743 = vmul.f32 %v731, %v731
      %v744 = vmul.f32 %v732, %v732
      %v745 = vsel %vm410, %v743, 0.0
      %v746 = vsel %vm410, %v744, 0.0
      %v747 = vadd.f32 %v745, %v746
      %v748 = vrot.slane %v747, 4
      %v749 = vadd.f32 %v747, %v748
      %v750 = vrot.slane %v749, 2
      %v751 = vadd.f32 %v749, %v750
      %v752 = vrot.slane %v751, 1
      %v753 = vadd.f32 %v751, %v752
      %v754 = vadd.f32 %v593, %v753
      %755 = vmatprep.subr.bf16.mxu0 0
      %756 = vmatpush1.bf16.msra.mxu0 0
      %757 = vmatprep.subr.bf16.mxu0 0
      %758 = vmatpush1.bf16.msra.mxu0 0
      %759 = vmatprep.subr.bf16.mxu0 0
      %760 = vmatpush1.bf16.msra.mxu0 0
      %761 = vmatprep.subr.bf16.mxu0 0
      %762 = vmatpush1.bf16.msra.mxu0 0
      %763 = vmatprep.subr.bf16.mxu0 0
      %764 = vmatpush1.bf16.msra.mxu0 0
      %765 = vmatprep.subr.bf16.mxu0 0
      %766 = vmatpush1.bf16.msra.mxu0 0
      %767 = vmatprep.subr.bf16.mxu0 0
      %768 = vmatpush1.bf16.msra.mxu0 0
      %769 = vmatprep.subr.bf16.mxu0 0
      %770 = vmatpush1.bf16.msra.mxu0 %v242
      %771 = vmatprep.subr.bf16.mxu0 0
      %772 = vmatpush2.bf16.msra.mxu0 0
      %773 = vmatprep.subr.bf16.mxu0 0
      %774 = vmatpush2.bf16.msra.mxu0 0
      %775 = vmatprep.subr.bf16.mxu0 0
      %776 = vmatpush2.bf16.msra.mxu0 0
      %777 = vmatprep.subr.bf16.mxu0 0
      %778 = vmatpush2.bf16.msra.mxu0 0
      %779 = vmatprep.subr.bf16.mxu0 0
      %780 = vmatpush2.bf16.msra.mxu0 0
      %781 = vmatprep.subr.bf16.mxu0 0
      %782 = vmatpush2.bf16.msra.mxu0 0
      %783 = vmatprep.subr.bf16.mxu0 0
      %784 = vmatpush2.bf16.msra.mxu0 0
      %785 = vmatprep.subr.bf16.mxu0 0
      %786 = vmatpush2.bf16.msra.mxu0 0
      %787 = vmatprep.mubr.bf16.mxu0 0
      %788 = vmatmul.mubr.bf16.gmra.mxu0 %v688
      %v789 = vpop.f32.mrf.mxu0
      %v790 = vadd.f32 0.0, %v789
      %v791 = vpop.f32.mrf.mxu0
      %v792 = vpop.f32.mrf.mxu0
      %v793 = vadd.f32 0.0, %v792
      %v794 = vpop.f32.mrf.mxu0
      %795 = vdwg.mxu0
      %796 = vmatprep.subr.bf16.mxu0 0
      %797 = vmatpush1.bf16.msra.mxu0 0
      %798 = vmatprep.subr.bf16.mxu0 0
      %799 = vmatpush1.bf16.msra.mxu0 0
      %800 = vmatprep.subr.bf16.mxu0 0
      %801 = vmatpush1.bf16.msra.mxu0 0
      %802 = vmatprep.subr.bf16.mxu0 0
      %803 = vmatpush1.bf16.msra.mxu0 0
      %804 = vmatprep.subr.bf16.mxu0 0
      %805 = vmatpush1.bf16.msra.mxu0 0
      %806 = vmatprep.subr.bf16.mxu0 0
      %807 = vmatpush1.bf16.msra.mxu0 0
      %808 = vmatprep.subr.bf16.mxu0 0
      %809 = vmatpush1.bf16.msra.mxu0 0
      %810 = vmatprep.subr.bf16.mxu0 0
      %811 = vmatpush1.bf16.msra.mxu0 %v299
      %812 = vmatprep.subr.bf16.mxu0 0
      %813 = vmatpush2.bf16.msra.mxu0 0
      %814 = vmatprep.subr.bf16.mxu0 0
      %815 = vmatpush2.bf16.msra.mxu0 0
      %816 = vmatprep.subr.bf16.mxu0 0
      %817 = vmatpush2.bf16.msra.mxu0 0
      %818 = vmatprep.subr.bf16.mxu0 0
      %819 = vmatpush2.bf16.msra.mxu0 0
      %820 = vmatprep.subr.bf16.mxu0 0
      %821 = vmatpush2.bf16.msra.mxu0 0
      %822 = vmatprep.subr.bf16.mxu0 0
      %823 = vmatpush2.bf16.msra.mxu0 0
      %824 = vmatprep.subr.bf16.mxu0 0
      %825 = vmatpush2.bf16.msra.mxu0 0
      %826 = vmatprep.subr.bf16.mxu0 0
      %827 = vmatpush2.bf16.msra.mxu0 0
      %828 = vmatprep.mubr.bf16.mxu0 0
      %829 = vmatmul.mubr.bf16.gmra.mxu0 %v527
      %v830 = vpop.f32.mrf.mxu0
      %v831 = vadd.f32 %v790, %v830
      %v832 = vpop.f32.mrf.mxu0
      %v833 = vpop.f32.mrf.mxu0
      %v834 = vadd.f32 %v793, %v833
      %v835 = vpop.f32.mrf.mxu0
      %836 = vdwg.mxu0
      %s837 = sadd.s32 %s209, 5
      %s838 = smul.u32 %s837, 2
      %s839 = smul.addr %s838, 4
      %s840 = scalar_lea.vmem %s193, %s839
      %v841 = vld [vmem:[%s840] sm:$0xf]
      %v842 = vld [vmem:[%s840 + $0x4] sm:$0xf]
      %v845 = vunpack.c.l.b16 %v841
      %v846 = vunpack.c.l.b16 %v842
      %v847 = vpack.c.b16 %v846, %v845
      %v849 = vsel %vm236, %v847, 0
      %851 = vmatprep.subr.bf16.mxu0 0
      %852 = vmatpush1.bf16.msra.mxu0 0
      %853 = vmatprep.subr.bf16.mxu0 0
      %854 = vmatpush1.bf16.msra.mxu0 0
      %855 = vmatprep.subr.bf16.mxu0 0
      %856 = vmatpush1.bf16.msra.mxu0 0
      %857 = vmatprep.subr.bf16.mxu0 0
      %858 = vmatpush1.bf16.msra.mxu0 0
      %859 = vmatprep.subr.bf16.mxu0 0
      %860 = vmatpush1.bf16.msra.mxu0 0
      %861 = vmatprep.subr.bf16.mxu0 0
      %862 = vmatpush1.bf16.msra.mxu0 0
      %863 = vmatprep.subr.bf16.mxu0 0
      %864 = vmatpush1.bf16.msra.mxu0 0
      %865 = vmatprep.subr.bf16.mxu0 0
      %866 = vmatpush1.bf16.msra.mxu0 %v365
      %867 = vmatprep.subr.bf16.mxu0 0
      %868 = vmatpush2.bf16.msra.mxu0 0
      %869 = vmatprep.subr.bf16.mxu0 0
      %870 = vmatpush2.bf16.msra.mxu0 0
      %871 = vmatprep.subr.bf16.mxu0 0
      %872 = vmatpush2.bf16.msra.mxu0 0
      %873 = vmatprep.subr.bf16.mxu0 0
      %874 = vmatpush2.bf16.msra.mxu0 0
      %875 = vmatprep.subr.bf16.mxu0 0
      %876 = vmatpush2.bf16.msra.mxu0 0
      %877 = vmatprep.subr.bf16.mxu0 0
      %878 = vmatpush2.bf16.msra.mxu0 0
      %879 = vmatprep.subr.bf16.mxu0 0
      %880 = vmatpush2.bf16.msra.mxu0 0
      %881 = vmatprep.subr.bf16.mxu0 0
      %882 = vmatpush2.bf16.msra.mxu0 0
      %883 = vmatprep.mubr.bf16.mxu0 0
      %884 = vmatmul.mubr.bf16.gmra.mxu0 %v849
      %v885 = vpop.f32.mrf.mxu0
      %v886 = vadd.f32 0.0, %v885
      %v887 = vpop.f32.mrf.mxu0
      %v888 = vpop.f32.mrf.mxu0
      %v889 = vadd.f32 0.0, %v888
      %v890 = vpop.f32.mrf.mxu0
      %891 = vdwg.mxu0
      %v892 = vadd.f32 %v831, %v886
      %v893 = vadd.f32 %v834, %v889
      %v894 = vsel %vm410, %v892, 0.0
      %v895 = vsel %vm410, %v893, 0.0
      %v896 = vadd.f32 %v894, %v895
      %v897 = vrot.slane %v896, 4
      %v898 = vadd.f32 %v896, %v897
      %v899 = vrot.slane %v898, 2
      %v900 = vadd.f32 %v898, %v899
      %v901 = vrot.slane %v900, 1
      %v902 = vadd.f32 %v900, %v901
      %v903 = vadd.f32 %v742, %v902
      %v904 = vmul.f32 %v892, %v892
      %v905 = vmul.f32 %v893, %v893
      %v906 = vsel %vm410, %v904, 0.0
      %v907 = vsel %vm410, %v905, 0.0
      %v908 = vadd.f32 %v906, %v907
      %v909 = vrot.slane %v908, 4
      %v910 = vadd.f32 %v908, %v909
      %v911 = vrot.slane %v910, 2
      %v912 = vadd.f32 %v910, %v911
      %v913 = vrot.slane %v912, 1
      %v914 = vadd.f32 %v912, %v913
      %v915 = vadd.f32 %v754, %v914
      %vm916 = vcmask 253952
      %917 = vst.msk [vmem:[%s198] sm:$0x1] %vm916, %v903
      %918 = vst.msk [vmem:[%s205] sm:$0x1] %vm916, %v915
      %s919 = smul.u32 %s19, 4
      %s920 = sadd.s32 %s919, %s20
      %p921 = scmp.lt.s32.totalorder %s920, 7
      %s922 = scalar_select %p921, %s920, 7
      %s923 = scalar_lea.vmem %s2, %s922
      %s924 = smul.u32 %s19, 4
      %s925 = sadd.s32 %s924, %s20
      %p926 = scmp.lt.s32.totalorder %s925, 7
      %s927 = scalar_select %p926, %s925, 7
      %s928 = scalar_lea.vmem %s3, %s927
      // Predicated region
      $region29: #{deconv_block_forward.2} parent=27 // pred_check
        %p929 = pneg %p96
      $region30: #{deconv_block_forward.2} parent=27 // pred_check_branch
        %931 = sbr.rel (%p929) target = $region32
      $region31: #{deconv_block_forward.2} parent=27 // pred_region
        %s932 = smul.u32 %s19, 4
        %s933 = sadd.s32 %s932, %s20
      $region32: #{deconv_block_forward.2} parent=27 // pred_fallthru
        _
      // Predicated region
      $region33: #{deconv_block_forward.2} parent=27 // pred_check
        %p934 = pneg %p126
      $region34: #{deconv_block_forward.2} parent=27 // pred_check_branch
        %936 = sbr.rel (%p934) target = $region36
      $region35: #{deconv_block_forward.2} parent=27 // pred_region
        %s937 = smul.u32 %s19, 4
        %s938 = sadd.s32 %s937, %s20
      $region36: #{deconv_block_forward.2} parent=27 // pred_fallthru
        _
    $region28: #{deconv_block_forward.2} parent=5 // pred_fallthru
      _
    %p939 = scmp.le.s32.totalorder 2, %s10
    // Predicated region
    $region37: #{deconv_block_forward.2} parent=5 // pred_check
      %p940 = pneg %p939
    $region38: #{deconv_block_forward.2} parent=5 // pred_check_branch
      %942 = sbr.rel (%p940) target = $region40
    $region39: #{deconv_block_forward.2} parent=5 // pred_region
      %s943 = ssub.s32 %s10, 2
      // Predicated region
      $region41: #{deconv_block_forward.2} parent=39 // pred_check
        %p944 = pneg %p102
      $region42: #{deconv_block_forward.2} parent=39 // pred_check_branch
        %946 = sbr.rel (%p944) target = $region44
      $region43: #{deconv_block_forward.2} parent=39 // pred_region
        %s947 = smul.u32 %s21, 4
        %s948 = sadd.s32 %s947, %s22
        %p949 = scmp.lt.s32.totalorder %s948, 7
        %s950 = scalar_select %p949, %s948, 7
        %s951 = scalar_lea.vmem %s2, %s950
      $region44: #{deconv_block_forward.2} parent=39 // pred_fallthru
        _
      // Predicated region
      $region45: #{deconv_block_forward.2} parent=39 // pred_check
        %p952 = pneg %p132
      $region46: #{deconv_block_forward.2} parent=39 // pred_check_branch
        %954 = sbr.rel (%p952) target = $region48
      $region47: #{deconv_block_forward.2} parent=39 // pred_region
        %s955 = smul.u32 %s21, 4
        %s956 = sadd.s32 %s955, %s22
        %p957 = scmp.lt.s32.totalorder %s956, 7
        %s958 = scalar_select %p957, %s956, 7
        %s959 = scalar_lea.vmem %s3, %s958
      $region48: #{deconv_block_forward.2} parent=39 // pred_fallthru
        _
    $region40: #{deconv_block_forward.2} parent=5 // pred_fallthru
      _
  $region6: #{deconv_block_forward.2} parent=0 // loop_footer
    %s14 = sadd.s32 1, %s10
  $region7: #{deconv_block_forward.2} parent=0 // loop_footer_branch
    %9 = sbr.rel target = $region3
  $region8: #{deconv_block_forward.2} parent=0 // loop_exit
    _

// kernel: deconv_block_forward.3
$region0: #{deconv_block_forward.3}
  #allocation0 [shape = 'u32[]', space=smem, size = 0x4, offset = 0x4, fixed_abs, tag = 'smem constant byte address 0x4 - core index']
  #allocation1 [shape = 'u32[144,128]{1,0:T(1,128)}', space=vmem, size = 0x12000, scoped, tag = 'internal scratch']
  %s0 = inlined_call_operand.vmem [shape: bf16[2,18,16,12], index: 0, kind: input, shape index: {}]
  %s1 = inlined_call_operand.vmem [shape: bf16[3,12,32], index: 1, kind: input, shape index: {}]
  %s2 = inlined_call_operand.vmem [shape: f32[3,1,32], index: 2, kind: input, shape index: {}]
  %s3 = inlined_call_operand.vmem [shape: f32[2,16,16,32], index: 3, kind: output, shape index: {}]
  %s4 = sld [smem:[#allocation0]]
  $region45: #{deconv_block_forward.3} parent=0
    _
  %s6 = ssub.s32 1, %s4
  %s7 = scalar_select 0, %s6, %s4
  loop: start=0, step=1, limit=10
  $region2: #{deconv_block_forward.3} parent=0 // loop_pre_header
    _
  $region3: #{deconv_block_forward.3} parent=0 // loop_header
    %s9 = sphi 0, %s13
    %p10 = scmp.ge.s32.totalorder %s9, 10
    %s16 = sphi 0, %s28
    %s17 = sphi 0, %s24
    %s18 = sphi 0, %s16
    %s19 = sphi 0, %s17
    %s20 = sphi 0, %s18
    %s21 = sphi 0, %s19
    %s31 = sphi 0, %s33
    %s34 = sphi 0, %s31
    %s35 = sphi 0, %s34
    %s51 = sphi 0, %s35
    %s55 = sphi 0, %s55
    %s57 = sphi 0, %s55
    %s58 = sphi 0, %s57
    %s72 = sphi 0, %s58
    %s76 = sphi 0, %s76
    %s78 = sphi 0, %s76
    %s79 = sphi 0, %s78
    %s93 = sphi 0, %s79
    %s101 = sphi 0, %s103
    %s104 = sphi 0, %s101
    %s105 = sphi 0, %s104
    %s121 = sphi 0, %s105
  $region4: #{deconv_block_forward.3} parent=0 // loop_header_branch
    %12 = sbr.rel (%p10) target = $region8
  $region5: #{deconv_block_forward.3} parent=0 // loop_body
    %s14 = ssub.s32 %s9, 1
    %s15 = ssub.s32 %s9, 2
    %s22 = sadd.s32 1, %s17
    %p23 = scmp.ge.s32.totalorder %s22, 4
    %s24 = scalar_select %p23, 0, %s22
    %s25 = sadd.s32 1, %s16
    %s26 = scalar_select %p23, %s25, %s16
    %p27 = scmp.ge.s32.totalorder %s26, 2
    %s28 = scalar_select %p27, 0, %s26
    %s29 = ssub.s32 %s16, %s28
    %p30 = scmp.eq.s32.totalorder %s29, 0
    %s32 = sadd.s32 %s31, 1
    %s33 = scalar_select %p30, %s31, %s32
    %p36 = pneg %p30
    %p37 = scmp.eq.s32.totalorder %s9, 7
    %p38 = por %p36, %p37
    %p39 = scmp.ne.s32.totalorder %s31, %s34
    %p40 = scmp.eq.s32.totalorder %s9, 0
    %p41 = por %p39, %p40
    %p42 = scmp.ne.s32.totalorder %s31, %s34
    %p43 = scmp.eq.s32.totalorder %s14, 7
    %p44 = por %p42, %p43
    %p45 = scmp.ne.s32.totalorder %s34, %s35
    %p46 = scmp.eq.s32.totalorder %s14, 0
    %p47 = por %p45, %p46
    %p48 = scmp.ne.s32.totalorder %s34, %s35
    %p49 = scmp.eq.s32.totalorder %s15, 7
    %p50 = por %p48, %p49
    %p52 = scmp.ne.s32.totalorder %s35, %s51
    %p53 = scmp.eq.s32.totalorder %s15, 0
    %p54 = por %p52, %p53
    %s56 = sadd.s32 %s55, 1
    %p59 = scmp.eq.s32.totalorder %s9, 7
    %p60 = scmp.ne.s32.totalorder %s55, %s57
    %p61 = scmp.eq.s32.totalorder %s9, 0
    %p62 = por %p60, %p61
    %p63 = scmp.ne.s32.totalorder %s55, %s57
    %p64 = scmp.eq.s32.totalorder %s14, 7
    %p65 = por %p63, %p64
    %p66 = scmp.ne.s32.totalorder %s57, %s58
    %p67 = scmp.eq.s32.totalorder %s14, 0
    %p68 = por %p66, %p67
    %p69 = scmp.ne.s32.totalorder %s57, %s58
    %p70 = scmp.eq.s32.totalorder %s15, 7
    %p71 = por %p69, %p70
    %p73 = scmp.ne.s32.totalorder %s58, %s72
    %p74 = scmp.eq.s32.totalorder %s15, 0
    %p75 = por %p73, %p74
    %s77 = sadd.s32 %s76, 1
    %p80 = scmp.eq.s32.totalorder %s9, 7
    %p81 = scmp.ne.s32.totalorder %s76, %s78
    %p82 = scmp.eq.s32.totalorder %s9, 0
    %p83 = por %p81, %p82
    %p84 = scmp.ne.s32.totalorder %s76, %s78
    %p85 = scmp.eq.s32.totalorder %s14, 7
    %p86 = por %p84, %p85
    %p87 = scmp.ne.s32.totalorder %s78, %s79
    %p88 = scmp.eq.s32.totalorder %s14, 0
    %p89 = por %p87, %p88
    %p90 = scmp.ne.s32.totalorder %s78, %s79
    %p91 = scmp.eq.s32.totalorder %s15, 7
    %p92 = por %p90, %p91
    %p94 = scmp.ne.s32.totalorder %s79, %s93
    %p95 = scmp.eq.s32.totalorder %s15, 0
    %p96 = por %p94, %p95
    %s97 = ssub.s32 %s16, %s28
    %s98 = ssub.s32 %s17, %s24
    %s99 = sor.u32 %s97, %s98
    %p100 = scmp.eq.s32.totalorder %s99, 0
    %s102 = sadd.s32 %s101, 1
    %s103 = scalar_select %p100, %s101, %s102
    %p106 = pneg %p100
    %p107 = scmp.eq.s32.totalorder %s9, 7
    %p108 = por %p106, %p107
    %p109 = scmp.ne.s32.totalorder %s101, %s104
    %p110 = scmp.eq.s32.totalorder %s9, 0
    %p111 = por %p109, %p110
    %p112 = scmp.ne.s32.totalorder %s101, %s104
    %p113 = scmp.eq.s32.totalorder %s14, 7
    %p114 = por %p112, %p113
    %p115 = scmp.ne.s32.totalorder %s104, %s105
    %p116 = scmp.eq.s32.totalorder %s14, 0
    %p117 = por %p115, %p116
    %p118 = scmp.ne.s32.totalorder %s104, %s105
    %p119 = scmp.eq.s32.totalorder %s15, 7
    %p120 = por %p118, %p119
    %p122 = scmp.ne.s32.totalorder %s105, %s121
    %p123 = scmp.eq.s32.totalorder %s15, 0
    %p124 = por %p122, %p123
    %p125 = scmp.le.s32.totalorder 1, %s9
    %p126 = scmp.lt.s32.totalorder %s9, 9
    %p127 = pnand %p125, %p126
    %p128 = pneg %p127
    // Predicated region
    $region9: #{deconv_block_forward.3} parent=5 // pred_check
      _
    $region10: #{deconv_block_forward.3} parent=5 // pred_check_branch
      %130 = sbr.rel (%p127) target = $region12
    $region11: #{deconv_block_forward.3} parent=5 // pred_region
      %s131 = ssub.s32 %s9, 1
      // Predicated region
      $region13: #{deconv_block_forward.3} parent=11 // pred_check
        %p132 = pneg %p68
      $region14: #{deconv_block_forward.3} parent=11 // pred_check_branch
        %134 = sbr.rel (%p132) target = $region16
      $region15: #{deconv_block_forward.3} parent=11 // pred_region
        _
      $region16: #{deconv_block_forward.3} parent=11 // pred_fallthru
        _
      // Predicated region
      $region17: #{deconv_block_forward.3} parent=11 // pred_check
        %p135 = pneg %p89
      $region18: #{deconv_block_forward.3} parent=11 // pred_check_branch
        %137 = sbr.rel (%p135) target = $region20
      $region19: #{deconv_block_forward.3} parent=11 // pred_region
        _
      $region20: #{deconv_block_forward.3} parent=11 // pred_fallthru
        _
    $region12: #{deconv_block_forward.3} parent=5 // pred_fallthru
      _
    %p138 = scmp.lt.s32.totalorder %s9, 8
    // Predicated region
    $region21: #{deconv_block_forward.3} parent=5 // pred_check
      %p139 = pneg %p138
    $region22: #{deconv_block_forward.3} parent=5 // pred_check_branch
      %141 = sbr.rel (%p139) target = $region24
    $region23: #{deconv_block_forward.3} parent=5 // pred_region
      // Predicated region
      $region25: #{deconv_block_forward.3} parent=23 // pred_check
        %p142 = pneg %p41
      $region26: #{deconv_block_forward.3} parent=23 // pred_check_branch
        %144 = sbr.rel (%p142) target = $region28
      $region27: #{deconv_block_forward.3} parent=23 // pred_region
        %p145 = scmp.lt.s32.totalorder %s16, 1
        %s146 = scalar_select %p145, %s16, 1
        %s147 = smul.addr %s146, 36
        %s148 = smul.addr %s147, 4
        %s149 = scalar_lea.vmem %s0, %s148
      $region28: #{deconv_block_forward.3} parent=23 // pred_fallthru
        _
    $region24: #{deconv_block_forward.3} parent=5 // pred_fallthru
      _
    %p150 = scmp.le.s32.totalorder 1, %s9
    %p151 = scmp.lt.s32.totalorder %s9, 9
    %p152 = pnand %p150, %p151
    %p153 = pneg %p152
    // Predicated region
    $region29: #{deconv_block_forward.3} parent=5 // pred_check
      _
    $region30: #{deconv_block_forward.3} parent=5 // pred_check_branch
      %155 = sbr.rel (%p152) target = $region32
    $region31: #{deconv_block_forward.3} parent=5 // pred_region
      %s156 = ssub.s32 %s9, 1
      %p157 = scmp.lt.s32.totalorder %s18, 1
      %s158 = scalar_select %p157, %s18, 1
      %s159 = smul.addr %s158, 36
      %s160 = smul.addr %s159, 4
      %s161 = scalar_lea.vmem %s0, %s160
      %p162 = pneg %p47
      %p163 = pneg %p44
      %p164 = pneg %p68
      %p165 = pneg %p65
      %p166 = pneg %p89
      %p167 = pneg %p86
      %p168 = pneg %p117
      %p169 = pneg %p114
      %s170 = smul.u32 4, %s19
      %p171 = scmp.lt.s32.totalorder %s18, 1
      %s172 = scalar_select %p171, %s18, 1
      %p173 = scmp.lt.s32.totalorder %s170, 15
      %s174 = scalar_select %p173, %s170, 15
      %s175 = smul.addr %s174, 2
      %s176 = smul.addr %s172, 32
      %s177 = sadd.s32 %s175, %s176
      %s178 = smul.addr %s177, 8
      %s179 = scalar_lea.vmem %s3, %s178
      %p180 = scmp.lt.s32.totalorder %s18, 1
      %s181 = scalar_select %p180, %s18, 1
      %s182 = smul.addr %s181, 36
      %s183 = smul.addr %s182, 4
      %s184 = scalar_lea.vmem %s0, %s183
      %s185 = smul.u32 4, %s19
      %p186 = scmp.lt.s32.totalorder %s18, 1
      %s187 = scalar_select %p186, %s18, 1
      %p188 = scmp.lt.s32.totalorder %s185, 15
      %s189 = scalar_select %p188, %s185, 15
      %s190 = smul.addr %s189, 2
      %s191 = smul.addr %s187, 32
      %s192 = sadd.s32 %s190, %s191
      %s193 = smul.addr %s192, 8
      %s194 = scalar_lea.vmem %s3, %s193
      %s195 = smul.u32 4, %s19
      %s197 = smul.u32 %s19, 4
      %v198 = vld [vmem:[%s2] sm:$0x1]
      %s199 = scalar_lea.vmem %s2, 1
      %v200 = vld [vmem:[%s199] sm:$0x1]
      %s201 = scalar_lea.vmem %s2, 2
      %v202 = vld [vmem:[%s201] sm:$0x1]
      %s203 = smul.u32 %s197, 2
      %s204 = smul.addr %s203, 4
      %s205 = scalar_lea.vmem %s184, %s204
      %v206 = vld [vmem:[%s205] sm:$0xf]
      %v207 = vld [vmem:[%s205 + $0x4] sm:$0xf]
      %v208 = vld [vmem:[%s1] sm:$0xf]
      %v209 = vld [vmem:[%s1 + $0x4] sm:$0x3]
      %s210 = sadd.s32 %s197, 1
      %s211 = smul.u32 %s210, 2
      %s212 = smul.addr %s211, 4
      %s213 = scalar_lea.vmem %s184, %s212
      %v214 = vld [vmem:[%s213] sm:$0xf]
      %v215 = vld [vmem:[%s213 + $0x4] sm:$0xf]
      %s216 = scalar_lea.vmem %s1, 8
      %v217 = vld [vmem:[%s216] sm:$0xf]
      %v218 = vld [vmem:[%s216 + $0x4] sm:$0x3]
      %v221 = vunpack.c.l.b16 %v214
      %v222 = vunpack.c.l.b16 %v215
      %v223 = vpack.c.b16 %v222, %v221
      %v226 = vunpack.c.l.b16 %v217
      %v227 = vunpack.c.l.b16 %v218
      %v228 = vpack.c.b16 %v227, %v226
      %vm229 = vcmask 97280
      %v231 = vsel %vm229, %v223, 0
      %vm233 = vcmask 1045504
      %v235 = vsel %vm233, %v228, 0
      %237 = vmatprep.subr.bf16.mxu0 0
      %238 = vmatpush1.bf16.msra.mxu0 0
      %239 = vmatprep.subr.bf16.mxu0 0
      %240 = vmatpush1.bf16.msra.mxu0 0
      %241 = vmatprep.subr.bf16.mxu0 0
      %242 = vmatpush1.bf16.msra.mxu0 0
      %243 = vmatprep.subr.bf16.mxu0 0
      %244 = vmatpush1.bf16.msra.mxu0 0
      %245 = vmatprep.subr.bf16.mxu0 0
      %246 = vmatpush1.bf16.msra.mxu0 0
      %247 = vmatprep.subr.bf16.mxu0 0
      %248 = vmatpush1.bf16.msra.mxu0 0
      %249 = vmatprep.subr.bf16.mxu0 0
      %250 = vmatpush1.bf16.msra.mxu0 0
      %251 = vmatprep.subr.bf16.mxu0 0
      %252 = vmatpush1.bf16.msra.mxu0 %v235
      %253 = vmatprep.subr.bf16.mxu0 0
      %254 = vmatpush2.bf16.msra.mxu0 0
      %255 = vmatprep.subr.bf16.mxu0 0
      %256 = vmatpush2.bf16.msra.mxu0 0
      %257 = vmatprep.subr.bf16.mxu0 0
      %258 = vmatpush2.bf16.msra.mxu0 0
      %259 = vmatprep.subr.bf16.mxu0 0
      %260 = vmatpush2.bf16.msra.mxu0 0
      %261 = vmatprep.subr.bf16.mxu0 0
      %262 = vmatpush2.bf16.msra.mxu0 0
      %263 = vmatprep.subr.bf16.mxu0 0
      %264 = vmatpush2.bf16.msra.mxu0 0
      %265 = vmatprep.subr.bf16.mxu0 0
      %266 = vmatpush2.bf16.msra.mxu0 0
      %267 = vmatprep.subr.bf16.mxu0 0
      %268 = vmatpush2.bf16.msra.mxu0 0
      %269 = vmatprep.mubr.bf16.mxu0 0
      %270 = vmatmul.mubr.bf16.gmra.mxu0 %v231
      %v271 = vpop.f32.mrf.mxu0
      %v272 = vadd.f32 0.0, %v271
      %v273 = vpop.f32.mrf.mxu0
      %v274 = vpop.f32.mrf.mxu0
      %v275 = vadd.f32 0.0, %v274
      %v276 = vpop.f32.mrf.mxu0
      %277 = vdwg.mxu0
      %v280 = vunpack.c.l.b16 %v206
      %v281 = vunpack.c.l.b16 %v207
      %v282 = vpack.c.b16 %v281, %v280
      %v285 = vunpack.c.l.b16 %v208
      %v286 = vunpack.c.l.b16 %v209
      %v287 = vpack.c.b16 %v286, %v285
      %v289 = vsel %vm229, %v282, 0
      %v292 = vsel %vm233, %v287, 0
      %294 = vmatprep.subr.bf16.mxu0 0
      %295 = vmatpush1.bf16.msra.mxu0 0
      %296 = vmatprep.subr.bf16.mxu0 0
      %297 = vmatpush1.bf16.msra.mxu0 0
      %298 = vmatprep.subr.bf16.mxu0 0
      %299 = vmatpush1.bf16.msra.mxu0 0
      %300 = vmatprep.subr.bf16.mxu0 0
      %301 = vmatpush1.bf16.msra.mxu0 0
      %302 = vmatprep.subr.bf16.mxu0 0
      %303 = vmatpush1.bf16.msra.mxu0 0
      %304 = vmatprep.subr.bf16.mxu0 0
      %305 = vmatpush1.bf16.msra.mxu0 0
      %306 = vmatprep.subr.bf16.mxu0 0
      %307 = vmatpush1.bf16.msra.mxu0 0
      %308 = vmatprep.subr.bf16.mxu0 0
      %309 = vmatpush1.bf16.msra.mxu0 %v292
      %310 = vmatprep.subr.bf16.mxu0 0
      %311 = vmatpush2.bf16.msra.mxu0 0
      %312 = vmatprep.subr.bf16.mxu0 0
      %313 = vmatpush2.bf16.msra.mxu0 0
      %314 = vmatprep.subr.bf16.mxu0 0
      %315 = vmatpush2.bf16.msra.mxu0 0
      %316 = vmatprep.subr.bf16.mxu0 0
      %317 = vmatpush2.bf16.msra.mxu0 0
      %318 = vmatprep.subr.bf16.mxu0 0
      %319 = vmatpush2.bf16.msra.mxu0 0
      %320 = vmatprep.subr.bf16.mxu0 0
      %321 = vmatpush2.bf16.msra.mxu0 0
      %322 = vmatprep.subr.bf16.mxu0 0
      %323 = vmatpush2.bf16.msra.mxu0 0
      %324 = vmatprep.subr.bf16.mxu0 0
      %325 = vmatpush2.bf16.msra.mxu0 0
      %326 = vmatprep.mubr.bf16.mxu0 0
      %327 = vmatmul.mubr.bf16.gmra.mxu0 %v289
      %v328 = vpop.f32.mrf.mxu0
      %v329 = vadd.f32 %v272, %v328
      %v330 = vpop.f32.mrf.mxu0
      %v331 = vpop.f32.mrf.mxu0
      %v332 = vadd.f32 %v275, %v331
      %v333 = vpop.f32.mrf.mxu0
      %334 = vdwg.mxu0
      %s335 = sadd.s32 %s197, 2
      %s336 = smul.u32 %s335, 2
      %s337 = smul.addr %s336, 4
      %s338 = scalar_lea.vmem %s184, %s337
      %v339 = vld [vmem:[%s338] sm:$0xf]
      %v340 = vld [vmem:[%s338 + $0x4] sm:$0xf]
      %s341 = scalar_lea.vmem %s1, 16
      %v342 = vld [vmem:[%s341] sm:$0xf]
      %v343 = vld [vmem:[%s341 + $0x4] sm:$0x3]
      %v346 = vunpack.c.l.b16 %v339
      %v347 = vunpack.c.l.b16 %v340
      %v348 = vpack.c.b16 %v347, %v346
      %v351 = vunpack.c.l.b16 %v342
      %v352 = vunpack.c.l.b16 %v343
      %v353 = vpack.c.b16 %v352, %v351
      %v355 = vsel %vm229, %v348, 0
      %v358 = vsel %vm233, %v353, 0
      %360 = vmatprep.subr.bf16.mxu0 0
      %361 = vmatpush1.bf16.msra.mxu0 0
      %362 = vmatprep.subr.bf16.mxu0 0
      %363 = vmatpush1.bf16.msra.mxu0 0
      %364 = vmatprep.subr.bf16.mxu0 0
      %365 = vmatpush1.bf16.msra.mxu0 0
      %366 = vmatprep.subr.bf16.mxu0 0
      %367 = vmatpush1.bf16.msra.mxu0 0
      %368 = vmatprep.subr.bf16.mxu0 0
      %369 = vmatpush1.bf16.msra.mxu0 0
      %370 = vmatprep.subr.bf16.mxu0 0
      %371 = vmatpush1.bf16.msra.mxu0 0
      %372 = vmatprep.subr.bf16.mxu0 0
      %373 = vmatpush1.bf16.msra.mxu0 0
      %374 = vmatprep.subr.bf16.mxu0 0
      %375 = vmatpush1.bf16.msra.mxu0 %v358
      %376 = vmatprep.subr.bf16.mxu0 0
      %377 = vmatpush2.bf16.msra.mxu0 0
      %378 = vmatprep.subr.bf16.mxu0 0
      %379 = vmatpush2.bf16.msra.mxu0 0
      %380 = vmatprep.subr.bf16.mxu0 0
      %381 = vmatpush2.bf16.msra.mxu0 0
      %382 = vmatprep.subr.bf16.mxu0 0
      %383 = vmatpush2.bf16.msra.mxu0 0
      %384 = vmatprep.subr.bf16.mxu0 0
      %385 = vmatpush2.bf16.msra.mxu0 0
      %386 = vmatprep.subr.bf16.mxu0 0
      %387 = vmatpush2.bf16.msra.mxu0 0
      %388 = vmatprep.subr.bf16.mxu0 0
      %389 = vmatpush2.bf16.msra.mxu0 0
      %390 = vmatprep.subr.bf16.mxu0 0
      %391 = vmatpush2.bf16.msra.mxu0 0
      %392 = vmatprep.mubr.bf16.mxu0 0
      %393 = vmatmul.mubr.bf16.gmra.mxu0 %v355
      %v394 = vpop.f32.mrf.mxu0
      %v395 = vadd.f32 0.0, %v394
      %v396 = vpop.f32.mrf.mxu0
      %v397 = vpop.f32.mrf.mxu0
      %v398 = vadd.f32 0.0, %v397
      %v399 = vpop.f32.mrf.mxu0
      %400 = vdwg.mxu0
      %v401 = vadd.f32 %v329, %v395
      %v402 = vadd.f32 %v332, %v398
      %v404 = vlaneseq
      %v405 = vshrl.u32 %v404, 7
      %v406 = vsub.s32 0, %v405
      %v407 = vrot.slane %v198, %v406
      %v409 = vmul.f32 %v401, %v407
      %v410 = vmul.f32 %v402, %v407
      %v412 = vlaneseq
      %v413 = vshrl.u32 %v412, 7
      %v414 = vsub.s32 0, %v413
      %v415 = vrot.slane %v200, %v414
      %v417 = vadd.f32 %v409, %v415
      %v418 = vadd.f32 %v410, %v415
      %vm419 = vcmp.ge.f32.partialorder %v417, 0.0
      %vm420 = vcmp.ge.f32.partialorder %v418, 0.0
      %v422 = vlaneseq
      %v423 = vshrl.u32 %v422, 7
      %v424 = vsub.s32 0, %v423
      %v425 = vrot.slane %v202, %v424
      %v427 = vmul.f32 %v425, %v417
      %v428 = vmul.f32 %v425, %v418
      %v429 = vsel %vm419, %v417, %v427
      %v430 = vsel %vm420, %v418, %v428
      %vm431 = vcmask 261120
      %432 = vst.msk [vmem:[%s194] sm:$0xff] %vm431, %v429
      %433 = vst.msk [vmem:[%s194 + $0x8] sm:$0xff] %vm431, %v430
      %v434 = vld [vmem:[%s213] sm:$0xf]
      %v435 = vld [vmem:[%s213 + $0x4] sm:$0xf]
      %v436 = vld [vmem:[%s1] sm:$0xf]
      %v437 = vld [vmem:[%s1 + $0x4] sm:$0x3]
      %v438 = vld [vmem:[%s338] sm:$0xf]
      %v439 = vld [vmem:[%s338 + $0x4] sm:$0xf]
      %v440 = vld [vmem:[%s216] sm:$0xf]
      %v441 = vld [vmem:[%s216 + $0x4] sm:$0x3]
      %v444 = vunpack.c.l.b16 %v438
      %v445 = vunpack.c.l.b16 %v439
      %v446 = vpack.c.b16 %v445, %v444
      %v449 = vunpack.c.l.b16 %v440
      %v450 = vunpack.c.l.b16 %v441
      %v451 = vpack.c.b16 %v450, %v449
      %v453 = vsel %vm229, %v446, 0
      %v456 = vsel %vm233, %v451, 0
      %458 = vmatprep.subr.bf16.mxu0 0
      %459 = vmatpush1.bf16.msra.mxu0 0
      %460 = vmatprep.subr.bf16.mxu0 0
      %461 = vmatpush1.bf16.msra.mxu0 0
      %462 = vmatprep.subr.bf16.mxu0 0
      %463 = vmatpush1.bf16.msra.mxu0 0
      %464 = vmatprep.subr.bf16.mxu0 0
      %465 = vmatpush1.bf16.msra.mxu0 0
      %466 = vmatprep.subr.bf16.mxu0 0
      %467 = vmatpush1.bf16.msra.mxu0 0
      %468 = vmatprep.subr.bf16.mxu0 0
      %469 = vmatpush1.bf16.msra.mxu0 0
      %470 = vmatprep.subr.bf16.mxu0 0
      %471 = vmatpush1.bf16.msra.mxu0 0
      %472 = vmatprep.subr.bf16.mxu0 0
      %473 = vmatpush1.bf16.msra.mxu0 %v456
      %474 = vmatprep.subr.bf16.mxu0 0
      %475 = vmatpush2.bf16.msra.mxu0 0
      %476 = vmatprep.subr.bf16.mxu0 0
      %477 = vmatpush2.bf16.msra.mxu0 0
      %478 = vmatprep.subr.bf16.mxu0 0
      %479 = vmatpush2.bf16.msra.mxu0 0
      %480 = vmatprep.subr.bf16.mxu0 0
      %481 = vmatpush2.bf16.msra.mxu0 0
      %482 = vmatprep.subr.bf16.mxu0 0
      %483 = vmatpush2.bf16.msra.mxu0 0
      %484 = vmatprep.subr.bf16.mxu0 0
      %485 = vmatpush2.bf16.msra.mxu0 0
      %486 = vmatprep.subr.bf16.mxu0 0
      %487 = vmatpush2.bf16.msra.mxu0 0
      %488 = vmatprep.subr.bf16.mxu0 0
      %489 = vmatpush2.bf16.msra.mxu0 0
      %490 = vmatprep.mubr.bf16.mxu0 0
      %491 = vmatmul.mubr.bf16.gmra.mxu0 %v453
      %v492 = vpop.f32.mrf.mxu0
      %v493 = vadd.f32 0.0, %v492
      %v494 = vpop.f32.mrf.mxu0
      %v495 = vpop.f32.mrf.mxu0
      %v496 = vadd.f32 0.0, %v495
      %v497 = vpop.f32.mrf.mxu0
      %498 = vdwg.mxu0
      %v501 = vunpack.c.l.b16 %v434
      %v502 = vunpack.c.l.b16 %v435
      %v503 = vpack.c.b16 %v502, %v501
      %v506 = vunpack.c.l.b16 %v436
      %v507 = vunpack.c.l.b16 %v437
      %v508 = vpack.c.b16 %v507, %v506
      %v510 = vsel %vm229, %v503, 0
      %v513 = vsel %vm233, %v508, 0
      %515 = vmatprep.subr.bf16.mxu0 0
      %516 = vmatpush1.bf16.msra.mxu0 0
      %517 = vmatprep.subr.bf16.mxu0 0
      %518 = vmatpush1.bf16.msra.mxu0 0
      %519 = vmatprep.subr.bf16.mxu0 0
      %520 = vmatpush1.bf16.msra.mxu0 0
      %521 = vmatprep.subr.bf16.mxu0 0
      %522 = vmatpush1.bf16.msra.mxu0 0
      %523 = vmatprep.subr.bf16.mxu0 0
      %524 = vmatpush1.bf16.msra.mxu0 0
      %525 = vmatprep.subr.bf16.mxu0 0
      %526 = vmatpush1.bf16.msra.mxu0 0
      %527 = vmatprep.subr.bf16.mxu0 0
      %528 = vmatpush1.bf16.msra.mxu0 0
      %529 = vmatprep.subr.bf16.mxu0 0
      %530 = vmatpush1.bf16.msra.mxu0 %v513
      %531 = vmatprep.subr.bf16.mxu0 0
      %532 = vmatpush2.bf16.msra.mxu0 0
      %533 = vmatprep.subr.bf16.mxu0 0
      %534 = vmatpush2.bf16.msra.mxu0 0
      %535 = vmatprep.subr.bf16.mxu0 0
      %536 = vmatpush2.bf16.msra.mxu0 0
      %537 = vmatprep.subr.bf16.mxu0 0
      %538 = vmatpush2.bf16.msra.mxu0 0
      %539 = vmatprep.subr.bf16.mxu0 0
      %540 = vmatpush2.bf16.msra.mxu0 0
      %541 = vmatprep.subr.bf16.mxu0 0
      %542 = vmatpush2.bf16.msra.mxu0 0
      %543 = vmatprep.subr.bf16.mxu0 0
      %544 = vmatpush2.bf16.msra.mxu0 0
      %545 = vmatprep.subr.bf16.mxu0 0
      %546 = vmatpush2.bf16.msra.mxu0 0
      %547 = vmatprep.mubr.bf16.mxu0 0
      %548 = vmatmul.mubr.bf16.gmra.mxu0 %v510
      %v549 = vpop.f32.mrf.mxu0
      %v550 = vadd.f32 %v493, %v549
      %v551 = vpop.f32.mrf.mxu0
      %v552 = vpop.f32.mrf.mxu0
      %v553 = vadd.f32 %v496, %v552
      %v554 = vpop.f32.mrf.mxu0
      %555 = vdwg.mxu0
      %s556 = sadd.s32 %s197, 3
      %s557 = smul.u32 %s556, 2
      %s558 = smul.addr %s557, 4
      %s559 = scalar_lea.vmem %s184, %s558
      %v560 = vld [vmem:[%s559] sm:$0xf]
      %v561 = vld [vmem:[%s559 + $0x4] sm:$0xf]
      %v562 = vld [vmem:[%s341] sm:$0xf]
      %v563 = vld [vmem:[%s341 + $0x4] sm:$0x3]
      %v566 = vunpack.c.l.b16 %v560
      %v567 = vunpack.c.l.b16 %v561
      %v568 = vpack.c.b16 %v567, %v566
      %v571 = vunpack.c.l.b16 %v562
      %v572 = vunpack.c.l.b16 %v563
      %v573 = vpack.c.b16 %v572, %v571
      %v575 = vsel %vm229, %v568, 0
      %v578 = vsel %vm233, %v573, 0
      %580 = vmatprep.subr.bf16.mxu0 0
      %581 = vmatpush1.bf16.msra.mxu0 0
      %582 = vmatprep.subr.bf16.mxu0 0
      %583 = vmatpush1.bf16.msra.mxu0 0
      %584 = vmatprep.subr.bf16.mxu0 0
      %585 = vmatpush1.bf16.msra.mxu0 0
      %586 = vmatprep.subr.bf16.mxu0 0
      %587 = vmatpush1.bf16.msra.mxu0 0
      %588 = vmatprep.subr.bf16.mxu0 0
      %589 = vmatpush1.bf16.msra.mxu0 0
      %590 = vmatprep.subr.bf16.mxu0 0
      %591 = vmatpush1.bf16.msra.mxu0 0
      %592 = vmatprep.subr.bf16.mxu0 0
      %593 = vmatpush1.bf16.msra.mxu0 0
      %594 = vmatprep.subr.bf16.mxu0 0
      %595 = vmatpush1.bf16.msra.mxu0 %v578
      %596 = vmatprep.subr.bf16.mxu0 0
      %597 = vmatpush2.bf16.msra.mxu0 0
      %598 = vmatprep.subr.bf16.mxu0 0
      %599 = vmatpush2.bf16.msra.mxu0 0
      %600 = vmatprep.subr.bf16.mxu0 0
      %601 = vmatpush2.bf16.msra.mxu0 0
      %602 = vmatprep.subr.bf16.mxu0 0
      %603 = vmatpush2.bf16.msra.mxu0 0
      %604 = vmatprep.subr.bf16.mxu0 0
      %605 = vmatpush2.bf16.msra.mxu0 0
      %606 = vmatprep.subr.bf16.mxu0 0
      %607 = vmatpush2.bf16.msra.mxu0 0
      %608 = vmatprep.subr.bf16.mxu0 0
      %609 = vmatpush2.bf16.msra.mxu0 0
      %610 = vmatprep.subr.bf16.mxu0 0
      %611 = vmatpush2.bf16.msra.mxu0 0
      %612 = vmatprep.mubr.bf16.mxu0 0
      %613 = vmatmul.mubr.bf16.gmra.mxu0 %v575
      %v614 = vpop.f32.mrf.mxu0
      %v615 = vadd.f32 0.0, %v614
      %v616 = vpop.f32.mrf.mxu0
      %v617 = vpop.f32.mrf.mxu0
      %v618 = vadd.f32 0.0, %v617
      %v619 = vpop.f32.mrf.mxu0
      %620 = vdwg.mxu0
      %v621 = vadd.f32 %v550, %v615
      %v622 = vadd.f32 %v553, %v618
      %v623 = vmul.f32 %v621, %v407
      %v624 = vmul.f32 %v622, %v407
      %v625 = vadd.f32 %v623, %v415
      %v626 = vadd.f32 %v624, %v415
      %vm627 = vcmp.ge.f32.partialorder %v625, 0.0
      %vm628 = vcmp.ge.f32.partialorder %v626, 0.0
      %v629 = vmul.f32 %v425, %v625
      %v630 = vmul.f32 %v425, %v626
      %v631 = vsel %vm627, %v625, %v629
      %v632 = vsel %vm628, %v626, %v630
      %s633 = scalar_lea.vmem %s194, 16
      %634 = vst.msk [vmem:[%s633] sm:$0xff] %vm431, %v631
      %635 = vst.msk [vmem:[%s633 + $0x8] sm:$0xff] %vm431, %v632
      %v636 = vld [vmem:[%s338] sm:$0xf]
      %v637 = vld [vmem:[%s338 + $0x4] sm:$0xf]
      %v638 = vld [vmem:[%s1] sm:$0xf]
      %v639 = vld [vmem:[%s1 + $0x4] sm:$0x3]
      %v640 = vld [vmem:[%s559] sm:$0xf]
      %v641 = vld [vmem:[%s559 + $0x4] sm:$0xf]
      %v642 = vld [vmem:[%s216] sm:$0xf]
      %v643 = vld [vmem:[%s216 + $0x4] sm:$0x3]
      %v646 = vunpack.c.l.b16 %v640
      %v647 = vunpack.c.l.b16 %v641
      %v648 = vpack.c.b16 %v647, %v646
      %v651 = vunpack.c.l.b16 %v642
      %v652 = vunpack.c.l.b16 %v643
      %v653 = vpack.c.b16 %v652, %v651
      %v655 = vsel %vm229, %v648, 0
      %v658 = vsel %vm233, %v653, 0
      %660 = vmatprep.subr.bf16.mxu0 0
      %661 = vmatpush1.bf16.msra.mxu0 0
      %662 = vmatprep.subr.bf16.mxu0 0
      %663 = vmatpush1.bf16.msra.mxu0 0
      %664 = vmatprep.subr.bf16.mxu0 0
      %665 = vmatpush1.bf16.msra.mxu0 0
      %666 = vmatprep.subr.bf16.mxu0 0
      %667 = vmatpush1.bf16.msra.mxu0 0
      %668 = vmatprep.subr.bf16.mxu0 0
      %669 = vmatpush1.bf16.msra.mxu0 0
      %670 = vmatprep.subr.bf16.mxu0 0
      %671 = vmatpush1.bf16.msra.mxu0 0
      %672 = vmatprep.subr.bf16.mxu0 0
      %673 = vmatpush1.bf16.msra.mxu0 0
      %674 = vmatprep.subr.bf16.mxu0 0
      %675 = vmatpush1.bf16.msra.mxu0 %v658
      %676 = vmatprep.subr.bf16.mxu0 0
      %677 = vmatpush2.bf16.msra.mxu0 0
      %678 = vmatprep.subr.bf16.mxu0 0
      %679 = vmatpush2.bf16.msra.mxu0 0
      %680 = vmatprep.subr.bf16.mxu0 0
      %681 = vmatpush2.bf16.msra.mxu0 0
      %682 = vmatprep.subr.bf16.mxu0 0
      %683 = vmatpush2.bf16.msra.mxu0 0
      %684 = vmatprep.subr.bf16.mxu0 0
      %685 = vmatpush2.bf16.msra.mxu0 0
      %686 = vmatprep.subr.bf16.mxu0 0
      %687 = vmatpush2.bf16.msra.mxu0 0
      %688 = vmatprep.subr.bf16.mxu0 0
      %689 = vmatpush2.bf16.msra.mxu0 0
      %690 = vmatprep.subr.bf16.mxu0 0
      %691 = vmatpush2.bf16.msra.mxu0 0
      %692 = vmatprep.mubr.bf16.mxu0 0
      %693 = vmatmul.mubr.bf16.gmra.mxu0 %v655
      %v694 = vpop.f32.mrf.mxu0
      %v695 = vadd.f32 0.0, %v694
      %v696 = vpop.f32.mrf.mxu0
      %v697 = vpop.f32.mrf.mxu0
      %v698 = vadd.f32 0.0, %v697
      %v699 = vpop.f32.mrf.mxu0
      %700 = vdwg.mxu0
      %v703 = vunpack.c.l.b16 %v636
      %v704 = vunpack.c.l.b16 %v637
      %v705 = vpack.c.b16 %v704, %v703
      %v708 = vunpack.c.l.b16 %v638
      %v709 = vunpack.c.l.b16 %v639
      %v710 = vpack.c.b16 %v709, %v708
      %v712 = vsel %vm229, %v705, 0
      %v715 = vsel %vm233, %v710, 0
      %717 = vmatprep.subr.bf16.mxu0 0
      %718 = vmatpush1.bf16.msra.mxu0 0
      %719 = vmatprep.subr.bf16.mxu0 0
      %720 = vmatpush1.bf16.msra.mxu0 0
      %721 = vmatprep.subr.bf16.mxu0 0
      %722 = vmatpush1.bf16.msra.mxu0 0
      %723 = vmatprep.subr.bf16.mxu0 0
      %724 = vmatpush1.bf16.msra.mxu0 0
      %725 = vmatprep.subr.bf16.mxu0 0
      %726 = vmatpush1.bf16.msra.mxu0 0
      %727 = vmatprep.subr.bf16.mxu0 0
      %728 = vmatpush1.bf16.msra.mxu0 0
      %729 = vmatprep.subr.bf16.mxu0 0
      %730 = vmatpush1.bf16.msra.mxu0 0
      %731 = vmatprep.subr.bf16.mxu0 0
      %732 = vmatpush1.bf16.msra.mxu0 %v715
      %733 = vmatprep.subr.bf16.mxu0 0
      %734 = vmatpush2.bf16.msra.mxu0 0
      %735 = vmatprep.subr.bf16.mxu0 0
      %736 = vmatpush2.bf16.msra.mxu0 0
      %737 = vmatprep.subr.bf16.mxu0 0
      %738 = vmatpush2.bf16.msra.mxu0 0
      %739 = vmatprep.subr.bf16.mxu0 0
      %740 = vmatpush2.bf16.msra.mxu0 0
      %741 = vmatprep.subr.bf16.mxu0 0
      %742 = vmatpush2.bf16.msra.mxu0 0
      %743 = vmatprep.subr.bf16.mxu0 0
      %744 = vmatpush2.bf16.msra.mxu0 0
      %745 = vmatprep.subr.bf16.mxu0 0
      %746 = vmatpush2.bf16.msra.mxu0 0
      %747 = vmatprep.subr.bf16.mxu0 0
      %748 = vmatpush2.bf16.msra.mxu0 0
      %749 = vmatprep.mubr.bf16.mxu0 0
      %750 = vmatmul.mubr.bf16.gmra.mxu0 %v712
      %v751 = vpop.f32.mrf.mxu0
      %v752 = vadd.f32 %v695, %v751
      %v753 = vpop.f32.mrf.mxu0
      %v754 = vpop.f32.mrf.mxu0
      %v755 = vadd.f32 %v698, %v754
      %v756 = vpop.f32.mrf.mxu0
      %757 = vdwg.mxu0
      %s758 = sadd.s32 %s197, 4
      %s759 = smul.u32 %s758, 2
      %s760 = smul.addr %s759, 4
      %s761 = scalar_lea.vmem %s184, %s760
      %v762 = vld [vmem:[%s761] sm:$0xf]
      %v763 = vld [vmem:[%s761 + $0x4] sm:$0xf]
      %v764 = vld [vmem:[%s341] sm:$0xf]
      %v765 = vld [vmem:[%s341 + $0x4] sm:$0x3]
      %v768 = vunpack.c.l.b16 %v762
      %v769 = vunpack.c.l.b16 %v763
      %v770 = vpack.c.b16 %v769, %v768
      %v773 = vunpack.c.l.b16 %v764
      %v774 = vunpack.c.l.b16 %v765
      %v775 = vpack.c.b16 %v774, %v773
      %v777 = vsel %vm229, %v770, 0
      %v780 = vsel %vm233, %v775, 0
      %782 = vmatprep.subr.bf16.mxu0 0
      %783 = vmatpush1.bf16.msra.mxu0 0
      %784 = vmatprep.subr.bf16.mxu0 0
      %785 = vmatpush1.bf16.msra.mxu0 0
      %786 = vmatprep.subr.bf16.mxu0 0
      %787 = vmatpush1.bf16.msra.mxu0 0
      %788 = vmatprep.subr.bf16.mxu0 0
      %789 = vmatpush1.bf16.msra.mxu0 0
      %790 = vmatprep.subr.bf16.mxu0 0
      %791 = vmatpush1.bf16.msra.mxu0 0
      %792 = vmatprep.subr.bf16.mxu0 0
      %793 = vmatpush1.bf16.msra.mxu0 0
      %794 = vmatprep.subr.bf16.mxu0 0
      %795 = vmatpush1.bf16.msra.mxu0 0
      %796 = vmatprep.subr.bf16.mxu0 0
      %797 = vmatpush1.bf16.msra.mxu0 %v780
      %798 = vmatprep.subr.bf16.mxu0 0
      %799 = vmatpush2.bf16.msra.mxu0 0
      %800 = vmatprep.subr.bf16.mxu0 0
      %801 = vmatpush2.bf16.msra.mxu0 0
      %802 = vmatprep.subr.bf16.mxu0 0
      %803 = vmatpush2.bf16.msra.mxu0 0
      %804 = vmatprep.subr.bf16.mxu0 0
      %805 = vmatpush2.bf16.msra.mxu0 0
      %806 = vmatprep.subr.bf16.mxu0 0
      %807 = vmatpush2.bf16.msra.mxu0 0
      %808 = vmatprep.subr.bf16.mxu0 0
      %809 = vmatpush2.bf16.msra.mxu0 0
      %810 = vmatprep.subr.bf16.mxu0 0
      %811 = vmatpush2.bf16.msra.mxu0 0
      %812 = vmatprep.subr.bf16.mxu0 0
      %813 = vmatpush2.bf16.msra.mxu0 0
      %814 = vmatprep.mubr.bf16.mxu0 0
      %815 = vmatmul.mubr.bf16.gmra.mxu0 %v777
      %v816 = vpop.f32.mrf.mxu0
      %v817 = vadd.f32 0.0, %v816
      %v818 = vpop.f32.mrf.mxu0
      %v819 = vpop.f32.mrf.mxu0
      %v820 = vadd.f32 0.0, %v819
      %v821 = vpop.f32.mrf.mxu0
      %822 = vdwg.mxu0
      %v823 = vadd.f32 %v752, %v817
      %v824 = vadd.f32 %v755, %v820
      %v825 = vmul.f32 %v823, %v407
      %v826 = vmul.f32 %v824, %v407
      %v827 = vadd.f32 %v825, %v415
      %v828 = vadd.f32 %v826, %v415
      %vm829 = vcmp.ge.f32.partialorder %v827, 0.0
      %vm830 = vcmp.ge.f32.partialorder %v828, 0.0
      %v831 = vmul.f32 %v425, %v827
      %v832 = vmul.f32 %v425, %v828
      %v833 = vsel %vm829, %v827, %v831
      %v834 = vsel %vm830, %v828, %v832
      %s835 = scalar_lea.vmem %s194, 32
      %836 = vst.msk [vmem:[%s835] sm:$0xff] %vm431, %v833
      %837 = vst.msk [vmem:[%s835 + $0x8] sm:$0xff] %vm431, %v834
      %v838 = vld [vmem:[%s559] sm:$0xf]
      %v839 = vld [vmem:[%s559 + $0x4] sm:$0xf]
      %v840 = vld [vmem:[%s1] sm:$0xf]
      %v841 = vld [vmem:[%s1 + $0x4] sm:$0x3]
      %v842 = vld [vmem:[%s761] sm:$0xf]
      %v843 = vld [vmem:[%s761 + $0x4] sm:$0xf]
      %v844 = vld [vmem:[%s216] sm:$0xf]
      %v845 = vld [vmem:[%s216 + $0x4] sm:$0x3]
      %v848 = vunpack.c.l.b16 %v842
      %v849 = vunpack.c.l.b16 %v843
      %v850 = vpack.c.b16 %v849, %v848
      %v853 = vunpack.c.l.b16 %v844
      %v854 = vunpack.c.l.b16 %v845
      %v855 = vpack.c.b16 %v854, %v853
      %v857 = vsel %vm229, %v850, 0
      %v860 = vsel %vm233, %v855, 0
      %862 = vmatprep.subr.bf16.mxu0 0
      %863 = vmatpush1.bf16.msra.mxu0 0
      %864 = vmatprep.subr.bf16.mxu0 0
      %865 = vmatpush1.bf16.msra.mxu0 0
      %866 = vmatprep.subr.bf16.mxu0 0
      %867 = vmatpush1.bf16.msra.mxu0 0
      %868 = vmatprep.subr.bf16.mxu0 0
      %869 = vmatpush1.bf16.msra.mxu0 0
      %870 = vmatprep.subr.bf16.mxu0 0
      %871 = vmatpush1.bf16.msra.mxu0 0
      %872 = vmatprep.subr.bf16.mxu0 0
      %873 = vmatpush1.bf16.msra.mxu0 0
      %874 = vmatprep.subr.bf16.mxu0 0
      %875 = vmatpush1.bf16.msra.mxu0 0
      %876 = vmatprep.subr.bf16.mxu0 0
      %877 = vmatpush1.bf16.msra.mxu0 %v860
      %878 = vmatprep.subr.bf16.mxu0 0
      %879 = vmatpush2.bf16.msra.mxu0 0
      %880 = vmatprep.subr.bf16.mxu0 0
      %881 = vmatpush2.bf16.msra.mxu0 0
      %882 = vmatprep.subr.bf16.mxu0 0
      %883 = vmatpush2.bf16.msra.mxu0 0
      %884 = vmatprep.subr.bf16.mxu0 0
      %885 = vmatpush2.bf16.msra.mxu0 0
      %886 = vmatprep.subr.bf16.mxu0 0
      %887 = vmatpush2.bf16.msra.mxu0 0
      %888 = vmatprep.subr.bf16.mxu0 0
      %889 = vmatpush2.bf16.msra.mxu0 0
      %890 = vmatprep.subr.bf16.mxu0 0
      %891 = vmatpush2.bf16.msra.mxu0 0
      %892 = vmatprep.subr.bf16.mxu0 0
      %893 = vmatpush2.bf16.msra.mxu0 0
      %894 = vmatprep.mubr.bf16.mxu0 0
      %895 = vmatmul.mubr.bf16.gmra.mxu0 %v857
      %v896 = vpop.f32.mrf.mxu0
      %v897 = vadd.f32 0.0, %v896
      %v898 = vpop.f32.mrf.mxu0
      %v899 = vpop.f32.mrf.mxu0
      %v900 = vadd.f32 0.0, %v899
      %v901 = vpop.f32.mrf.mxu0
      %902 = vdwg.mxu0
      %v905 = vunpack.c.l.b16 %v838
      %v906 = vunpack.c.l.b16 %v839
      %v907 = vpack.c.b16 %v906, %v905
      %v910 = vunpack.c.l.b16 %v840
      %v911 = vunpack.c.l.b16 %v841
      %v912 = vpack.c.b16 %v911, %v910
      %v914 = vsel %vm229, %v907, 0
      %v917 = vsel %vm233, %v912, 0
      %919 = vmatprep.subr.bf16.mxu0 0
      %920 = vmatpush1.bf16.msra.mxu0 0
      %921 = vmatprep.subr.bf16.mxu0 0
      %922 = vmatpush1.bf16.msra.mxu0 0
      %923 = vmatprep.subr.bf16.mxu0 0
      %924 = vmatpush1.bf16.msra.mxu0 0
      %925 = vmatprep.subr.bf16.mxu0 0
      %926 = vmatpush1.bf16.msra.mxu0 0
      %927 = vmatprep.subr.bf16.mxu0 0
      %928 = vmatpush1.bf16.msra.mxu0 0
      %929 = vmatprep.subr.bf16.mxu0 0
      %930 = vmatpush1.bf16.msra.mxu0 0
      %931 = vmatprep.subr.bf16.mxu0 0
      %932 = vmatpush1.bf16.msra.mxu0 0
      %933 = vmatprep.subr.bf16.mxu0 0
      %934 = vmatpush1.bf16.msra.mxu0 %v917
      %935 = vmatprep.subr.bf16.mxu0 0
      %936 = vmatpush2.bf16.msra.mxu0 0
      %937 = vmatprep.subr.bf16.mxu0 0
      %938 = vmatpush2.bf16.msra.mxu0 0
      %939 = vmatprep.subr.bf16.mxu0 0
      %940 = vmatpush2.bf16.msra.mxu0 0
      %941 = vmatprep.subr.bf16.mxu0 0
      %942 = vmatpush2.bf16.msra.mxu0 0
      %943 = vmatprep.subr.bf16.mxu0 0
      %944 = vmatpush2.bf16.msra.mxu0 0
      %945 = vmatprep.subr.bf16.mxu0 0
      %946 = vmatpush2.bf16.msra.mxu0 0
      %947 = vmatprep.subr.bf16.mxu0 0
      %948 = vmatpush2.bf16.msra.mxu0 0
      %949 = vmatprep.subr.bf16.mxu0 0
      %950 = vmatpush2.bf16.msra.mxu0 0
      %951 = vmatprep.mubr.bf16.mxu0 0
      %952 = vmatmul.mubr.bf16.gmra.mxu0 %v914
      %v953 = vpop.f32.mrf.mxu0
      %v954 = vadd.f32 %v897, %v953
      %v955 = vpop.f32.mrf.mxu0
      %v956 = vpop.f32.mrf.mxu0
      %v957 = vadd.f32 %v900, %v956
      %v958 = vpop.f32.mrf.mxu0
      %959 = vdwg.mxu0
      %s960 = sadd.s32 %s197, 5
      %s961 = smul.u32 %s960, 2
      %s962 = smul.addr %s961, 4
      %s963 = scalar_lea.vmem %s184, %s962
      %v964 = vld [vmem:[%s963] sm:$0xf]
      %v965 = vld [vmem:[%s963 + $0x4] sm:$0xf]
      %v966 = vld [vmem:[%s341] sm:$0xf]
      %v967 = vld [vmem:[%s341 + $0x4] sm:$0x3]
      %v970 = vunpack.c.l.b16 %v964
      %v971 = vunpack.c.l.b16 %v965
      %v972 = vpack.c.b16 %v971, %v970
      %v975 = vunpack.c.l.b16 %v966
      %v976 = vunpack.c.l.b16 %v967
      %v977 = vpack.c.b16 %v976, %v975
      %v979 = vsel %vm229, %v972, 0
      %v982 = vsel %vm233, %v977, 0
      %984 = vmatprep.subr.bf16.mxu0 0
      %985 = vmatpush1.bf16.msra.mxu0 0
      %986 = vmatprep.subr.bf16.mxu0 0
      %987 = vmatpush1.bf16.msra.mxu0 0
      %988 = vmatprep.subr.bf16.mxu0 0
      %989 = vmatpush1.bf16.msra.mxu0 0
      %990 = vmatprep.subr.bf16.mxu0 0
      %991 = vmatpush1.bf16.msra.mxu0 0
      %992 = vmatprep.subr.bf16.mxu0 0
      %993 = vmatpush1.bf16.msra.mxu0 0
      %994 = vmatprep.subr.bf16.mxu0 0
      %995 = vmatpush1.bf16.msra.mxu0 0
      %996 = vmatprep.subr.bf16.mxu0 0
      %997 = vmatpush1.bf16.msra.mxu0 0
      %998 = vmatprep.subr.bf16.mxu0 0
      %999 = vmatpush1.bf16.msra.mxu0 %v982
      %1000 = vmatprep.subr.bf16.mxu0 0
      %1001 = vmatpush2.bf16.msra.mxu0 0
      %1002 = vmatprep.subr.bf16.mxu0 0
      %1003 = vmatpush2.bf16.msra.mxu0 0
      %1004 = vmatprep.subr.bf16.mxu0 0
      %1005 = vmatpush2.bf16.msra.mxu0 0
      %1006 = vmatprep.subr.bf16.mxu0 0
      %1007 = vmatpush2.bf16.msra.mxu0 0
      %1008 = vmatprep.subr.bf16.mxu0 0
      %1009 = vmatpush2.bf16.msra.mxu0 0
      %1010 = vmatprep.subr.bf16.mxu0 0
      %1011 = vmatpush2.bf16.msra.mxu0 0
      %1012 = vmatprep.subr.bf16.mxu0 0
      %1013 = vmatpush2.bf16.msra.mxu0 0
      %1014 = vmatprep.subr.bf16.mxu0 0
      %1015 = vmatpush2.bf16.msra.mxu0 0
      %1016 = vmatprep.mubr.bf16.mxu0 0
      %1017 = vmatmul.mubr.bf16.gmra.mxu0 %v979
      %v1018 = vpop.f32.mrf.mxu0
      %v1019 = vadd.f32 0.0, %v1018
      %v1020 = vpop.f32.mrf.mxu0
      %v1021 = vpop.f32.mrf.mxu0
      %v1022 = vadd.f32 0.0, %v1021
      %v1023 = vpop.f32.mrf.mxu0
      %1024 = vdwg.mxu0
      %v1025 = vadd.f32 %v954, %v1019
      %v1026 = vadd.f32 %v957, %v1022
      %v1027 = vmul.f32 %v1025, %v407
      %v1028 = vmul.f32 %v1026, %v407
      %v1029 = vadd.f32 %v1027, %v415
      %v1030 = vadd.f32 %v1028, %v415
      %vm1031 = vcmp.ge.f32.partialorder %v1029, 0.0
      %vm1032 = vcmp.ge.f32.partialorder %v1030, 0.0
      %v1033 = vmul.f32 %v425, %v1029
      %v1034 = vmul.f32 %v425, %v1030
      %v1035 = vsel %vm1031, %v1029, %v1033
      %v1036 = vsel %vm1032, %v1030, %v1034
      %s1037 = scalar_lea.vmem %s194, 48
      %1038 = vst.msk [vmem:[%s1037] sm:$0xff] %vm431, %v1035
      %1039 = vst.msk [vmem:[%s1037 + $0x8] sm:$0xff] %vm431, %v1036
      %s1040 = smul.u32 4, %s19
      %p1041 = scmp.lt.s32.totalorder %s18, 1
      %s1042 = scalar_select %p1041, %s18, 1
      %p1043 = scmp.lt.s32.totalorder %s1040, 15
      %s1044 = scalar_select %p1043, %s1040, 15
      %s1045 = smul.addr %s1044, 2
      %s1046 = smul.addr %s1042, 32
      %s1047 = sadd.s32 %s1045, %s1046
      %s1048 = smul.addr %s1047, 8
      %s1049 = scalar_lea.vmem %s3, %s1048
      // Predicated region
      $region33: #{deconv_block_forward.3} parent=31 // pred_check
        %p1050 = pneg %p114
      $region34: #{deconv_block_forward.3} parent=31 // pred_check_branch
        %1052 = sbr.rel (%p1050) target = $region36
      $region35: #{deconv_block_forward.3} parent=31 // pred_region
        %s1053 = smul.u32 4, %s19
      $region36: #{deconv_block_forward.3} parent=31 // pred_fallthru
        _
    $region32: #{deconv_block_forward.3} parent=5 // pred_fallthru
      _
    %p1054 = scmp.le.s32.totalorder 2, %s9
    // Predicated region
    $region37: #{deconv_block_forward.3} parent=5 // pred_check
      %p1055 = pneg %p1054
    $region38: #{deconv_block_forward.3} parent=5 // pred_check_branch
      %1057 = sbr.rel (%p1055) target = $region40
    $region39: #{deconv_block_forward.3} parent=5 // pred_region
      %s1058 = ssub.s32 %s9, 2
      // Predicated region
      $region41: #{deconv_block_forward.3} parent=39 // pred_check
        %p1059 = pneg %p120
      $region42: #{deconv_block_forward.3} parent=39 // pred_check_branch
        %1061 = sbr.rel (%p1059) target = $region44
      $region43: #{deconv_block_forward.3} parent=39 // pred_region
        %s1062 = smul.u32 4, %s21
        %p1063 = scmp.lt.s32.totalorder %s20, 1
        %s1064 = scalar_select %p1063, %s20, 1
        %p1065 = scmp.lt.s32.totalorder %s1062, 15
        %s1066 = scalar_select %p1065, %s1062, 15
        %s1067 = smul.addr %s1066, 2
        %s1068 = smul.addr %s1064, 32
        %s1069 = sadd.s32 %s1067, %s1068
        %s1070 = smul.addr %s1069, 8
        %s1071 = scalar_lea.vmem %s3, %s1070
      $region44: #{deconv_block_forward.3} parent=39 // pred_fallthru
        _
    $region40: #{deconv_block_forward.3} parent=5 // pred_fallthru
      _
  $region6: #{deconv_block_forward.3} parent=0 // loop_footer
    %s13 = sadd.s32 1, %s9
  $region7: #{deconv_block_forward.3} parent=0 // loop_footer_branch
    %8 = sbr.rel target = $region3
  $region8: #{deconv_block_forward.3} parent=0 // loop_exit
    _

</llo_original>
